<compile_context>
chip_gen: v7x
topology: tpu7x:2x2x1
jax: 0.10.0
libtpu: 0.0.40
codegen_flags: <defaults>
</compile_context>

<pallas_src>
import math

import numpy as np
import jax
import jax.numpy as jnp
from jax import lax
from jax.experimental import pallas as pl
from jax.experimental.pallas import tpu as pltpu

LN_EPS = 1e-5
_INV_SQRT2 = 0.7071067811865476
_HI = lax.Precision.HIGHEST                     # reference only


def _vmem_limit_bytes():
    cap = 128 * 1024 * 1024
    try:
        info = pltpu.get_tpu_info()
        cap = int(getattr(info, "vmem_capacity_bytes", cap) or cap)
    except Exception:
        pass
    # ~3/4 of per-core VMEM: ~96 MiB on v5e/v6e (128 MiB), ~48 MiB on v7x (64 MiB/TC)
    return max(32 * 1024 * 1024, min((cap * 3) // 4, 96 * 1024 * 1024))


_VMEM_LIMIT = _vmem_limit_bytes()


def _cparams(*sem):
    return pltpu.CompilerParams(dimension_semantics=sem,
                                vmem_limit_bytes=_VMEM_LIMIT)


def _pow2_at_most(x):
    return 1 << (max(int(x), 1).bit_length() - 1)


def _fit(budget_bytes, bytes_per_unit, lo, hi):
    """Power-of-two unit count fitting `budget_bytes`, clamped to [lo, hi]."""
    u = _pow2_at_most(budget_bytes // max(int(bytes_per_unit), 1))
    return int(max(lo, min(hi, u)))


def _tile(n, target, mult=8):
    """Largest legal tile <= target: divisor of n that is a multiple of `mult`;
    otherwise the full dim (which is always a legal block size)."""
    n, target = int(n), int(target)
    if n <= target:
        return n
    for t in range(target, 0, -1):
        if n % t == 0 and t % mult == 0:
            return t
    return n


def _erf(z):
    # Abramowitz & Stegun 7.1.26 (|err| < 1.5e-7); reciprocal goes to the EUP slot.
    a1, a2, a3, a4, a5 = (0.254829592, -0.284496736, 1.421413741,
                          -1.453152027, 1.061405429)
    p = 0.3275911
    s = jnp.where(z >= 0.0, 1.0, -1.0)
    az = jnp.abs(z)
    t = pl.reciprocal(1.0 + p * az, approx=True)
    poly = ((((a5 * t + a4) * t + a3) * t + a2) * t + a1) * t
    return s * (1.0 - poly * jnp.exp(-az * az))


def _gelu_exact(x):
    # torch.nn.GELU() default = exact (erf-based) GELU
    return 0.5 * x * (1.0 + _erf(x * _INV_SQRT2))


def _layernorm(x, w, b):
    mu = jnp.mean(x, axis=-1, keepdims=True)
    xc = x - mu
    var = jnp.mean(xc * xc, axis=-1, keepdims=True)
    return xc * lax.rsqrt(var + LN_EPS) * w + b


# ---------------- kernel 1: LN1 + Q/K/V projections (N-tiled weight panels)
def _ln_qkv_kernel(x_ref, lnw_ref, lnb_ref,
                   wq_ref, bq_ref, wk_ref, bk_ref, wv_ref, bv_ref,
                   q_ref, k_ref, v_ref):
    y = _layernorm(x_ref[...], lnw_ref[...], lnb_ref[...]).astype(jnp.bfloat16)
    q_ref[...] = (jnp.dot(y, wq_ref[...], preferred_element_type=jnp.float32)
                  + bq_ref[...]).astype(q_ref.dtype)
    k_ref[...] = (jnp.dot(y, wk_ref[...], preferred_element_type=jnp.float32)
                  + bk_ref[...]).astype(k_ref.dtype)
    v_ref[...] = (jnp.dot(y, wv_ref[...], preferred_element_type=jnp.float32)
                  + bv_ref[...]).astype(v_ref.dtype)


# ---------------- kernel 2: flash attention tiled over (batch, head, q, kv)
def _flash_attn_kernel(q_ref, k_ref, v_ref, o_ref, m_sc, l_sc, acc_sc):
    kv = pl.program_id(3)

    @pl.when(kv == 0)
    def _():
        m_sc[...] = jnp.full_like(m_sc, -jnp.inf)
        l_sc[...] = jnp.zeros_like(l_sc)
        acc_sc[...] = jnp.zeros_like(acc_sc)

    s = jnp.einsum("hqd,hkd->hqk", q_ref[...], k_ref[...],
                   preferred_element_type=jnp.float32)        # q pre-scaled by 1/sqrt(d)
    m_prev = m_sc[...]
    m_new = jnp.maximum(m_prev, jnp.max(s, axis=-1, keepdims=True))
    alpha = jnp.exp(m_prev - m_new)
    p = jnp.exp(s - m_new)
    l_sc[...] = alpha * l_sc[...] + jnp.sum(p, axis=-1, keepdims=True)
    acc_sc[...] = alpha * acc_sc[...] + jnp.einsum(
        "hqk,hkd->hqd", p.astype(jnp.bfloat16), v_ref[...],
        preferred_element_type=jnp.float32)
    m_sc[...] = m_new

    @pl.when(kv == pl.num_programs(3) - 1)
    def _():
        o_ref[...] = (acc_sc[...] *
                      pl.reciprocal(l_sc[...], approx=True)).astype(o_ref.dtype)


# ---------------- kernel 3: out_proj (K-tiled accumulation) + residual
def _outproj_kernel(x_ref, a_ref, wo_ref, bo_ref, x1_ref):
    @pl.when(pl.program_id(1) == 0)
    def _():
        x1_ref[...] = x_ref[...] + bo_ref[...]
    x1_ref[...] += jnp.dot(a_ref[...], wo_ref[...],
                           preferred_element_type=jnp.float32)


# ---------------- kernel 4: LN2 + MLP (H-streamed panels) + residual
def _ln_mlp_kernel(x1_ref, ln2w_ref, ln2b_ref, w1_ref, b1_ref, w2_ref, b2_ref,
                   o_ref, y2_sc):
    @pl.when(pl.program_id(1) == 0)
    def _():
        x1 = x1_ref[...]
        y2_sc[...] = _layernorm(x1, ln2w_ref[...], ln2b_ref[...]).astype(y2_sc.dtype)
        o_ref[...] = x1 + b2_ref[...]

    hid = jnp.dot(y2_sc[...], w1_ref[...],
                  preferred_element_type=jnp.float32) + b1_ref[...]
    g = _gelu_exact(hid)
    # TODO(synk): on v6e/v7x the erf polynomial could be evaluated in bf16 to halve
    # VPU slot pressure; kept in f32 so numerics track the f32 reference closely.
    o_ref[...] += jnp.dot(g.astype(jnp.bfloat16), w2_ref[...],
                          preferred_element_type=jnp.float32)


def gpt3_block_forward(x, params, num_heads):
    B, L, D = x.shape
    d = D // num_heads
    H = params["w1"].shape[0]                    # mlp hidden = mlp_ratio * D
    R = B * L
    f32, bf16 = jnp.float32, jnp.bfloat16
    row = lambda v: v.reshape(1, -1).astype(f32)
    limit = _VMEM_LIMIT

    # ---- VMEM-budgeted tile choices (per-kernel residency estimates, bytes/unit) ----
    tN = _tile(D, _fit(2 * limit // 5, 12 * D, 128, 512), mult=128)            # 3 bf16 panels x2 buf
    tR1 = _tile(R, _fit(3 * limit // 10, 8 * D + 12 * tN, 8, 1024), mult=8)    # x f32 x2 + 3 outs x2
    th = _tile(num_heads, 8, mult=1)
    tKV = _tile(L, _fit(limit // 4, 8 * th * d, 128, 1024), mult=8)            # K+V bf16 x2 buf
    tQ = _tile(L, _fit(limit // 5, th * (12 * d + 1024), 128, 512), mult=8)    # q/o/acc + padded m,l
    tR3 = _tile(R, _fit(limit // 3, 16 * D, 8, 1024), mult=8)                  # x + x1 f32 x2
    tK3 = _tile(D, _fit(limit // 6, 4 * D + 4 * tR3, 128, 512), mult=128)      # wo panel + attn block
    tR4 = _tile(R, _fit(3 * limit // 10, 18 * D, 8, 1024), mult=8)             # x1 + out f32 x2 + y2
    tH = _tile(H, _fit(limit // 4, 8 * D + 4 * tR4, 128, 1024), mult=128)      # w1+w2 panels + hid

    x2 = x.reshape(R, D)

    # fold the attention 1/sqrt(d) scale into the Q projection (free pre-scale)
    scale = 1.0 / math.sqrt(d)
    wq = (params["wq"].T * scale).astype(bf16)
    wk = params["wk"].T.astype(bf16)
    wv = params["wv"].T.astype(bf16)
    bq = row(params["bq"]) * scale
    bk = row(params["bk"])
    bv = row(params["bv"])

    # ---- kernel 1: LN1 + QKV projections (weight N panels outermost -> DMA'd once)
    q, k, v = pl.pallas_call(
        _ln_qkv_kernel,
        out_shape=(jax.ShapeDtypeStruct((R, D), bf16),) * 3,
        grid=(D // tN, R // tR1),
        in_specs=[
            pl.BlockSpec((tR1, D), lambda j, i: (i, 0)),     # x rows
            pl.BlockSpec((1, D), lambda j, i: (0, 0)),        # ln1 w
            pl.BlockSpec((1, D), lambda j, i: (0, 0)),        # ln1 b
            pl.BlockSpec((D, tN), lambda j, i: (0, j)),        # wq panel
            pl.BlockSpec((1, tN), lambda j, i: (0, j)),        # bq panel
            pl.BlockSpec((D, tN), lambda j, i: (0, j)),        # wk panel
            pl.BlockSpec((1, tN), lambda j, i: (0, j)),        # bk panel
            pl.BlockSpec((D, tN), lambda j, i: (0, j)),        # wv panel
            pl.BlockSpec((1, tN), lambda j, i: (0, j)),        # bv panel
        ],
        out_specs=(pl.BlockSpec((tR1, tN), lambda j, i: (i, j)),) * 3,
        compiler_params=_cparams("parallel", "parallel"),
    )(x2, row(params["ln1_w"]), row(params["ln1_b"]), wq, bq, wk, bk, wv, bv)

    # glue: torch's `.view(B, h, L, d)` head split (pure reshape, NO transpose)
    qh = q.reshape(B, num_heads, L, d)
    kh = k.reshape(B, num_heads, L, d)
    vh = v.reshape(B, num_heads, L, d)

    # ---- kernel 2: flash attention; 3 parallel axes + arbitrary KV axis
    attn = pl.pallas_call(
        _flash_attn_kernel,
        out_shape=jax.ShapeDtypeStruct((B, num_heads, L, d), bf16),
        grid=(B, num_heads // th, L // tQ, L // tKV),
        in_specs=[
            pl.BlockSpec((None, th, tQ, d), lambda b, g, qi, kv: (b, g, qi, 0)),
            pl.BlockSpec((None, th, tKV, d), lambda b, g, qi, kv: (b, g, kv, 0)),
            pl.BlockSpec((None, th, tKV, d), lambda b, g, qi, kv: (b, g, kv, 0)),
        ],
        out_specs=pl.BlockSpec((None, th, tQ, d), lambda b, g, qi, kv: (b, g, qi, 0)),
        scratch_shapes=[
            pltpu.VMEM((th, tQ, 1), f32),    # running max
            pltpu.VMEM((th, tQ, 1), f32),    # running sum
            pltpu.VMEM((th, tQ, d), f32),    # output accumulator
        ],
        compiler_params=_cparams("parallel", "parallel", "parallel", "arbitrary"),
    )(qh, kh, vh)

    attn2 = attn.reshape(R, D)               # torch `.reshape(B, L, D)`, rows flattened

    # ---- kernel 3: out_proj with K-tiled accumulation into the resident output block
    x1 = pl.pallas_call(
        _outproj_kernel,
        out_shape=jax.ShapeDtypeStruct((R, D), f32),
        grid=(R // tR3, D // tK3),
        in_specs=[
            pl.BlockSpec((tR3, D), lambda i, kk: (i, 0)),      # x rows (residual)
            pl.BlockSpec((tR3, tK3), lambda i, kk: (i, kk)),    # attn rows, K panel
            pl.BlockSpec((tK3, D), lambda i, kk: (kk, 0)),      # wo K panel (streamed)
            pl.BlockSpec((1, D), lambda i, kk: (0, 0)),         # bo
        ],
        out_specs=pl.BlockSpec((tR3, D), lambda i, kk: (i, 0)),
        compiler_params=_cparams("parallel", "arbitrary"),
    )(x2, attn2, params["wo"].T.astype(bf16), row(params["bo"]))

    # ---- kernel 4: LN2 + MLP(GELU) with H-streamed panels accumulated into output
    out = pl.pallas_call(
        _ln_mlp_kernel,
        out_shape=jax.ShapeDtypeStruct((R, D), f32),
        grid=(R // tR4, H // tH),
        in_specs=[
            pl.BlockSpec((tR4, D), lambda i, j: (i, 0)),       # x1
            pl.BlockSpec((1, D), lambda i, j: (0, 0)),          # ln2 w
            pl.BlockSpec((1, D), lambda i, j: (0, 0)),          # ln2 b
            pl.BlockSpec((D, tH), lambda i, j: (0, j)),          # w1 panel
            pl.BlockSpec((1, tH), lambda i, j: (0, j)),          # b1 panel
            pl.BlockSpec((tH, D), lambda i, j: (j, 0)),          # w2 panel
            pl.BlockSpec((1, D), lambda i, j: (0, 0)),           # b2
        ],
        out_specs=pl.BlockSpec((tR4, D), lambda i, j: (i, 0)),
        scratch_shapes=[pltpu.VMEM((tR4, D), bf16)],             # LN2 output (matmul lhs)
        compiler_params=_cparams("parallel", "arbitrary"),
    )(x1, row(params["ln2_w"]), row(params["ln2_b"]),
      params["w1"].T.astype(bf16), row(params["b1"]),
      params["w2"].T.astype(bf16), row(params["b2"]))

    return out.reshape(B, L, D)


def init_params(key, D, mlp_ratio=4):
    H = mlp_ratio * D
    ks = jax.random.split(key, 16)
    n = lambda k, shp, s=0.02: (s * jax.random.normal(k, shp)).astype(jnp.float32)
    return dict(
        ln1_w=(1.0 + 0.1 * jax.random.normal(ks[12], (D,))).astype(jnp.float32),
        ln1_b=n(ks[13], (D,), 0.1),
        ln2_w=(1.0 + 0.1 * jax.random.normal(ks[14], (D,))).astype(jnp.float32),
        ln2_b=n(ks[15], (D,), 0.1),
        wq=n(ks[0], (D, D)), bq=n(ks[1], (D,)),
        wk=n(ks[2], (D, D)), bk=n(ks[3], (D,)),
        wv=n(ks[4], (D, D)), bv=n(ks[5], (D,)),
        wo=n(ks[6], (D, D)), bo=n(ks[7], (D,)),
        w1=n(ks[8], (H, D)), b1=n(ks[9], (H,)),     # torch Linear: (out, in)
        w2=n(ks[10], (D, H)), b2=n(ks[11], (D,)),
    )


def reference_forward(x, params, num_heads):
    # pure-JAX f32 reference mirroring the PyTorch module
    B, L, D = x.shape
    d = D // num_heads

    def ln(x, w, b):
        mu = x.mean(-1, keepdims=True)
        var = ((x - mu) ** 2).mean(-1, keepdims=True)
        return (x - mu) / jnp.sqrt(var + LN_EPS) * w + b

    y = ln(x, params["ln1_w"], params["ln1_b"])
    lin = lambda z, w, b: jnp.dot(z, w.T, precision=_HI) + b
    Q = lin(y, params["wq"], params["bq"]).reshape(B, num_heads, L, d)
    K = lin(y, params["wk"], params["bk"]).reshape(B, num_heads, L, d)
    V = lin(y, params["wv"], params["bv"]).reshape(B, num_heads, L, d)
    s = jnp.einsum("bhqd,bhkd->bhqk", Q, K, precision=_HI) / jnp.sqrt(jnp.float32(d))
    p = jax.nn.softmax(s, axis=-1)
    a = jnp.einsum("bhqk,bhkd->bhqd", p, V, precision=_HI).reshape(B, L, D)
    x1 = x + lin(a, params["wo"], params["bo"])
    y2 = ln(x1, params["ln2_w"], params["ln2_b"])
    h = lin(y2, params["w1"], params["b1"])
    g = jax.nn.gelu(h, approximate=False)
    return x1 + lin(g, params["w2"], params["b2"])


if __name__ == "__main__":
    B, L, D, heads = 2, 8, 32, 4
    key = jax.random.PRNGKey(0)
    kx, kp = jax.random.split(key)
    x = jax.random.normal(kx, (B, L, D), dtype=jnp.float32)
    params = init_params(kp, D)

    fwd = jax.jit(gpt3_block_forward, static_argnums=2)
    out = jax.block_until_ready(fwd(x, params, heads))

    ref = reference_forward(x, params, heads)
    assert out.shape == (B, L, D)
    # bf16 MXU operands (f32 accumulation) -> slightly looser tolerance vs f32 ref
    np.testing.assert_allclose(np.asarray(out), np.asarray(ref),
                               rtol=2e-2, atol=2e-2)
    print("KERNEL_OK")
</pallas_src>

<mosaic_0001>
module attributes {stable_mosaic.version = 11 : i64} {
  func.func @_ln_qkv_kernel(%arg0: i32, %arg1: i32, %arg2: memref<16x32xf32, #tpu.memory_space<vmem>>, %arg3: memref<1x32xf32, #tpu.memory_space<vmem>>, %arg4: memref<1x32xf32, #tpu.memory_space<vmem>>, %arg5: memref<32x32xbf16, #tpu.memory_space<vmem>>, %arg6: memref<1x32xf32, #tpu.memory_space<vmem>>, %arg7: memref<32x32xbf16, #tpu.memory_space<vmem>>, %arg8: memref<1x32xf32, #tpu.memory_space<vmem>>, %arg9: memref<32x32xbf16, #tpu.memory_space<vmem>>, %arg10: memref<1x32xf32, #tpu.memory_space<vmem>>, %arg11: memref<16x32xbf16, #tpu.memory_space<vmem>>, %arg12: memref<16x32xbf16, #tpu.memory_space<vmem>>, %arg13: memref<16x32xbf16, #tpu.memory_space<vmem>>) attributes {dimension_semantics = [#tpu.dimension_semantics<parallel>, #tpu.dimension_semantics<parallel>], iteration_bounds = array<i64: 1, 1>, scalar_prefetch = 0 : i64, scratch_operands = 0 : i64, tpu.core_type = #tpu.core_type<tc>, window_params = [{transform_indices = @transform_0, window_bounds = array<i64: 16, 32>}, {pipeline_mode = #tpu.pipeline_mode<synchronous>, transform_indices = @transform_1, window_bounds = array<i64: 1, 32>}, {pipeline_mode = #tpu.pipeline_mode<synchronous>, transform_indices = @transform_2, window_bounds = array<i64: 1, 32>}, {transform_indices = @transform_3, window_bounds = array<i64: 32, 32>}, {transform_indices = @transform_4, window_bounds = array<i64: 1, 32>}, {transform_indices = @transform_5, window_bounds = array<i64: 32, 32>}, {transform_indices = @transform_6, window_bounds = array<i64: 1, 32>}, {transform_indices = @transform_7, window_bounds = array<i64: 32, 32>}, {transform_indices = @transform_8, window_bounds = array<i64: 1, 32>}, {transform_indices = @transform_9, window_bounds = array<i64: 16, 32>}, {transform_indices = @transform_10, window_bounds = array<i64: 16, 32>}, {transform_indices = @transform_11, window_bounds = array<i64: 16, 32>}]} {
    %c0 = arith.constant 0 : index
    %c0_0 = arith.constant 0 : index
    %0 = vector.load %arg2[%c0, %c0_0] : memref<16x32xf32, #tpu.memory_space<vmem>>, vector<16x32xf32>
    %c0_1 = arith.constant 0 : index
    %c0_2 = arith.constant 0 : index
    %1 = vector.load %arg3[%c0_1, %c0_2] : memref<1x32xf32, #tpu.memory_space<vmem>>, vector<1x32xf32>
    %c0_3 = arith.constant 0 : index
    %c0_4 = arith.constant 0 : index
    %2 = vector.load %arg4[%c0_3, %c0_4] : memref<1x32xf32, #tpu.memory_space<vmem>>, vector<1x32xf32>
    %cst = arith.constant dense<0.000000e+00> : vector<16xf32>
    %3 = vector.multi_reduction <add>, %0, %cst [1] : vector<16x32xf32> to vector<16xf32>
    %4 = vector.shape_cast %3 : vector<16xf32> to vector<16x1xf32>
    %cst_5 = arith.constant 3.200000e+01 : f32
    %5 = vector.broadcast %cst_5 : f32 to vector<16x1xf32>
    %6 = arith.divf %4, %5 : vector<16x1xf32>
    %7 = vector.broadcast %6 : vector<16x1xf32> to vector<16x32xf32>
    %8 = arith.subf %0, %7 : vector<16x32xf32>
    %9 = arith.mulf %8, %8 : vector<16x32xf32>
    %cst_6 = arith.constant dense<0.000000e+00> : vector<16xf32>
    %10 = vector.multi_reduction <add>, %9, %cst_6 [1] : vector<16x32xf32> to vector<16xf32>
    %11 = vector.shape_cast %10 : vector<16xf32> to vector<16x1xf32>
    %cst_7 = arith.constant 3.200000e+01 : f32
    %12 = vector.broadcast %cst_7 : f32 to vector<16x1xf32>
    %13 = arith.divf %11, %12 : vector<16x1xf32>
    %cst_8 = arith.constant 9.99999974E-6 : f32
    %14 = vector.broadcast %cst_8 : f32 to vector<16x1xf32>
    %15 = arith.addf %13, %14 : vector<16x1xf32>
    %16 = math.rsqrt %15 : vector<16x1xf32>
    %17 = vector.broadcast %16 : vector<16x1xf32> to vector<16x32xf32>
    %18 = arith.mulf %8, %17 : vector<16x32xf32>
    %19 = vector.broadcast %1 : vector<1x32xf32> to vector<16x32xf32>
    %20 = arith.mulf %18, %19 : vector<16x32xf32>
    %21 = vector.broadcast %2 : vector<1x32xf32> to vector<16x32xf32>
    %22 = arith.addf %20, %21 : vector<16x32xf32>
    %23 = arith.truncf %22 : vector<16x32xf32> to vector<16x32xbf16>
    %c0_9 = arith.constant 0 : index
    %c0_10 = arith.constant 0 : index
    %24 = vector.load %arg5[%c0_9, %c0_10] : memref<32x32xbf16, #tpu.memory_space<vmem>>, vector<32x32xbf16>
    %cst_11 = arith.constant dense<0.000000e+00> : vector<16x32xf32>
    %25 = tpu.matmul %23, %24, %cst_11 {dimension_numbers = #tpu.dot_dimension_numbers<[1], [0], [0], [1], [0, 0, 1, 1], [], []>} : vector<16x32xbf16>, vector<32x32xbf16>, vector<16x32xf32> -> vector<16x32xf32>
    %c0_12 = arith.constant 0 : index
    %c0_13 = arith.constant 0 : index
    %26 = vector.load %arg6[%c0_12, %c0_13] : memref<1x32xf32, #tpu.memory_space<vmem>>, vector<1x32xf32>
    %27 = vector.broadcast %26 : vector<1x32xf32> to vector<16x32xf32>
    %28 = arith.addf %25, %27 : vector<16x32xf32>
    %29 = arith.truncf %28 : vector<16x32xf32> to vector<16x32xbf16>
    %c0_14 = arith.constant 0 : index
    %c0_15 = arith.constant 0 : index
    %30 = vector.load %arg11[%c0_14, %c0_15] : memref<16x32xbf16, #tpu.memory_space<vmem>>, vector<16x32xbf16>
    tpu.vector_store %arg11[%c0_14, %c0_15], %29 {strides = array<i32>} : memref<16x32xbf16, #tpu.memory_space<vmem>>, vector<16x32xbf16>,
    %c0_16 = arith.constant 0 : index
    %c0_17 = arith.constant 0 : index
    %31 = vector.load %arg7[%c0_16, %c0_17] : memref<32x32xbf16, #tpu.memory_space<vmem>>, vector<32x32xbf16>
    %cst_18 = arith.constant dense<0.000000e+00> : vector<16x32xf32>
    %32 = tpu.matmul %23, %31, %cst_18 {dimension_numbers = #tpu.dot_dimension_numbers<[1], [0], [0], [1], [0, 0, 1, 1], [], []>} : vector<16x32xbf16>, vector<32x32xbf16>, vector<16x32xf32> -> vector<16x32xf32>
    %c0_19 = arith.constant 0 : index
    %c0_20 = arith.constant 0 : index
    %33 = vector.load %arg8[%c0_19, %c0_20] : memref<1x32xf32, #tpu.memory_space<vmem>>, vector<1x32xf32>
    %34 = vector.broadcast %33 : vector<1x32xf32> to vector<16x32xf32>
    %35 = arith.addf %32, %34 : vector<16x32xf32>
    %36 = arith.truncf %35 : vector<16x32xf32> to vector<16x32xbf16>
    %c0_21 = arith.constant 0 : index
    %c0_22 = arith.constant 0 : index
    %37 = vector.load %arg12[%c0_21, %c0_22] : memref<16x32xbf16, #tpu.memory_space<vmem>>, vector<16x32xbf16>
    tpu.vector_store %arg12[%c0_21, %c0_22], %36 {strides = array<i32>} : memref<16x32xbf16, #tpu.memory_space<vmem>>, vector<16x32xbf16>,
    %c0_23 = arith.constant 0 : index
    %c0_24 = arith.constant 0 : index
    %38 = vector.load %arg9[%c0_23, %c0_24] : memref<32x32xbf16, #tpu.memory_space<vmem>>, vector<32x32xbf16>
    %cst_25 = arith.constant dense<0.000000e+00> : vector<16x32xf32>
    %39 = tpu.matmul %23, %38, %cst_25 {dimension_numbers = #tpu.dot_dimension_numbers<[1], [0], [0], [1], [0, 0, 1, 1], [], []>} : vector<16x32xbf16>, vector<32x32xbf16>, vector<16x32xf32> -> vector<16x32xf32>
    %c0_26 = arith.constant 0 : index
    %c0_27 = arith.constant 0 : index
    %40 = vector.load %arg10[%c0_26, %c0_27] : memref<1x32xf32, #tpu.memory_space<vmem>>, vector<1x32xf32>
    %41 = vector.broadcast %40 : vector<1x32xf32> to vector<16x32xf32>
    %42 = arith.addf %39, %41 : vector<16x32xf32>
    %43 = arith.truncf %42 : vector<16x32xf32> to vector<16x32xbf16>
    %c0_28 = arith.constant 0 : index
    %c0_29 = arith.constant 0 : index
    %44 = vector.load %arg13[%c0_28, %c0_29] : memref<16x32xbf16, #tpu.memory_space<vmem>>, vector<16x32xbf16>
    tpu.vector_store %arg13[%c0_28, %c0_29], %43 {strides = array<i32>} : memref<16x32xbf16, #tpu.memory_space<vmem>>, vector<16x32xbf16>,
    return
  }
  func.func @transform_0(%arg0: i32, %arg1: i32) -> (i32, i32) {
    %c0_i32 = arith.constant 0 : i32
    %c0_i32_0 = arith.constant 0 : i32
    return %arg1, %c0_i32 : i32, i32
  }
  func.func @transform_1(%arg0: i32, %arg1: i32) -> (i32, i32) {
    %c0_i32 = arith.constant 0 : i32
    %c0_i32_0 = arith.constant 0 : i32
    %c0_i32_1 = arith.constant 0 : i32
    return %c0_i32, %c0_i32_0 : i32, i32
  }
  func.func @transform_2(%arg0: i32, %arg1: i32) -> (i32, i32) {
    %c0_i32 = arith.constant 0 : i32
    %c0_i32_0 = arith.constant 0 : i32
    %c0_i32_1 = arith.constant 0 : i32
    return %c0_i32, %c0_i32_0 : i32, i32
  }
  func.func @transform_3(%arg0: i32, %arg1: i32) -> (i32, i32) {
    %c0_i32 = arith.constant 0 : i32
    %c0_i32_0 = arith.constant 0 : i32
    return %c0_i32, %arg0 : i32, i32
  }
  func.func @transform_4(%arg0: i32, %arg1: i32) -> (i32, i32) {
    %c0_i32 = arith.constant 0 : i32
    %c0_i32_0 = arith.constant 0 : i32
    return %c0_i32, %arg0 : i32, i32
  }
  func.func @transform_5(%arg0: i32, %arg1: i32) -> (i32, i32) {
    %c0_i32 = arith.constant 0 : i32
    %c0_i32_0 = arith.constant 0 : i32
    return %c0_i32, %arg0 : i32, i32
  }
  func.func @transform_6(%arg0: i32, %arg1: i32) -> (i32, i32) {
    %c0_i32 = arith.constant 0 : i32
    %c0_i32_0 = arith.constant 0 : i32
    return %c0_i32, %arg0 : i32, i32
  }
  func.func @transform_7(%arg0: i32, %arg1: i32) -> (i32, i32) {
    %c0_i32 = arith.constant 0 : i32
    %c0_i32_0 = arith.constant 0 : i32
    return %c0_i32, %arg0 : i32, i32
  }
  func.func @transform_8(%arg0: i32, %arg1: i32) -> (i32, i32) {
    %c0_i32 = arith.constant 0 : i32
    %c0_i32_0 = arith.constant 0 : i32
    return %c0_i32, %arg0 : i32, i32
  }
  func.func @transform_9(%arg0: i32, %arg1: i32) -> (i32, i32) {
    %c0_i32 = arith.constant 0 : i32
    return %arg1, %arg0 : i32, i32
  }
  func.func @transform_10(%arg0: i32, %arg1: i32) -> (i32, i32) {
    %c0_i32 = arith.constant 0 : i32
    return %arg1, %arg0 : i32, i32
  }
  func.func @transform_11(%arg0: i32, %arg1: i32) -> (i32, i32) {
    %c0_i32 = arith.constant 0 : i32
    return %arg1, %arg0 : i32, i32
  }
}

module attributes {stable_mosaic.version = 11 : i64} {
  func.func @_outproj_kernel(%arg0: i32, %arg1: i32, %arg2: memref<16x32xf32, #tpu.memory_space<vmem>>, %arg3: memref<16x32xbf16, #tpu.memory_space<vmem>>, %arg4: memref<32x32xbf16, #tpu.memory_space<vmem>>, %arg5: memref<1x32xf32, #tpu.memory_space<vmem>>, %arg6: memref<16x32xf32, #tpu.memory_space<vmem>>) attributes {dimension_semantics = [#tpu.dimension_semantics<parallel>, #tpu.dimension_semantics<arbitrary>], iteration_bounds = array<i64: 1, 1>, scalar_prefetch = 0 : i64, scratch_operands = 0 : i64, tpu.core_type = #tpu.core_type<tc>, window_params = [{transform_indices = @transform_0, window_bounds = array<i64: 16, 32>}, {transform_indices = @transform_1, window_bounds = array<i64: 16, 32>}, {transform_indices = @transform_2, window_bounds = array<i64: 32, 32>}, {pipeline_mode = #tpu.pipeline_mode<synchronous>, transform_indices = @transform_3, window_bounds = array<i64: 1, 32>}, {transform_indices = @transform_4, window_bounds = array<i64: 16, 32>}]} {
    %c0_i32 = arith.constant 0 : i32
    %0 = arith.cmpi eq, %arg1, %c0_i32 : i32
    %1 = arith.extui %0 : i1 to i32
    %c0_i32_0 = arith.constant 0 : i32
    %2 = arith.cmpi ne, %1, %c0_i32_0 : i32
    scf.if %2 {
      %c0_8 = arith.constant 0 : index
      %c0_9 = arith.constant 0 : index
      %9 = vector.load %arg2[%c0_8, %c0_9] : memref<16x32xf32, #tpu.memory_space<vmem>>, vector<16x32xf32>
      %c0_10 = arith.constant 0 : index
      %c0_11 = arith.constant 0 : index
      %10 = vector.load %arg5[%c0_10, %c0_11] : memref<1x32xf32, #tpu.memory_space<vmem>>, vector<1x32xf32>
      %11 = vector.broadcast %10 : vector<1x32xf32> to vector<16x32xf32>
      %12 = arith.addf %9, %11 : vector<16x32xf32>
      %c0_12 = arith.constant 0 : index
      %c0_13 = arith.constant 0 : index
      %13 = vector.load %arg6[%c0_12, %c0_13] : memref<16x32xf32, #tpu.memory_space<vmem>>, vector<16x32xf32>
      tpu.vector_store %arg6[%c0_12, %c0_13], %12 {strides = array<i32>} : memref<16x32xf32, #tpu.memory_space<vmem>>, vector<16x32xf32>,
    } else {
    }
    %c0 = arith.constant 0 : index
    %c0_1 = arith.constant 0 : index
    %3 = vector.load %arg6[%c0, %c0_1] : memref<16x32xf32, #tpu.memory_space<vmem>>, vector<16x32xf32>
    %c0_2 = arith.constant 0 : index
    %c0_3 = arith.constant 0 : index
    %4 = vector.load %arg3[%c0_2, %c0_3] : memref<16x32xbf16, #tpu.memory_space<vmem>>, vector<16x32xbf16>
    %c0_4 = arith.constant 0 : index
    %c0_5 = arith.constant 0 : index
    %5 = vector.load %arg4[%c0_4, %c0_5] : memref<32x32xbf16, #tpu.memory_space<vmem>>, vector<32x32xbf16>
    %cst = arith.constant dense<0.000000e+00> : vector<16x32xf32>
    %6 = tpu.matmul %4, %5, %cst {dimension_numbers = #tpu.dot_dimension_numbers<[1], [0], [0], [1], [0, 0, 1, 1], [], []>} : vector<16x32xbf16>, vector<32x32xbf16>, vector<16x32xf32> -> vector<16x32xf32>
    %7 = arith.addf %3, %6 : vector<16x32xf32>
    %c0_6 = arith.constant 0 : index
    %c0_7 = arith.constant 0 : index
    %8 = vector.load %arg6[%c0_6, %c0_7] : memref<16x32xf32, #tpu.memory_space<vmem>>, vector<16x32xf32>
    tpu.vector_store %arg6[%c0_6, %c0_7], %7 {strides = array<i32>} : memref<16x32xf32, #tpu.memory_space<vmem>>, vector<16x32xf32>,
    return
  }
  func.func @transform_0(%arg0: i32, %arg1: i32) -> (i32, i32) {
    %c0_i32 = arith.constant 0 : i32
    %c0_i32_0 = arith.constant 0 : i32
    return %arg0, %c0_i32 : i32, i32
  }
  func.func @transform_1(%arg0: i32, %arg1: i32) -> (i32, i32) {
    %c0_i32 = arith.constant 0 : i32
    return %arg0, %arg1 : i32, i32
  }
  func.func @transform_2(%arg0: i32, %arg1: i32) -> (i32, i32) {
    %c0_i32 = arith.constant 0 : i32
    %c0_i32_0 = arith.constant 0 : i32
    return %arg1, %c0_i32 : i32, i32
  }
  func.func @transform_3(%arg0: i32, %arg1: i32) -> (i32, i32) {
    %c0_i32 = arith.constant 0 : i32
    %c0_i32_0 = arith.constant 0 : i32
    %c0_i32_1 = arith.constant 0 : i32
    return %c0_i32, %c0_i32_0 : i32, i32
  }
  func.func @transform_4(%arg0: i32, %arg1: i32) -> (i32, i32) {
    %c0_i32 = arith.constant 0 : i32
    %c0_i32_0 = arith.constant 0 : i32
    return %arg0, %c0_i32 : i32, i32
  }
}

module attributes {stable_mosaic.version = 11 : i64} {
  func.func @_flash_attn_kernel(%arg0: i32, %arg1: i32, %arg2: i32, %arg3: i32, %arg4: memref<1x4x8x8xbf16, #tpu.memory_space<vmem>>, %arg5: memref<1x4x8x8xbf16, #tpu.memory_space<vmem>>, %arg6: memref<1x4x8x8xbf16, #tpu.memory_space<vmem>>, %arg7: memref<1x4x8x8xbf16, #tpu.memory_space<vmem>>, %arg8: memref<4x8x1xf32, #tpu.memory_space<vmem>>, %arg9: memref<4x8x1xf32, #tpu.memory_space<vmem>>, %arg10: memref<4x8x8xf32, #tpu.memory_space<vmem>>) attributes {dimension_semantics = [#tpu.dimension_semantics<parallel>, #tpu.dimension_semantics<parallel>, #tpu.dimension_semantics<parallel>, #tpu.dimension_semantics<arbitrary>], iteration_bounds = array<i64: 2, 1, 1, 1>, scalar_prefetch = 0 : i64, scratch_operands = 3 : i64, tpu.core_type = #tpu.core_type<tc>, window_params = [{transform_indices = @transform_0, window_bounds = array<i64: 1, 4, 8, 8>}, {transform_indices = @transform_1, window_bounds = array<i64: 1, 4, 8, 8>}, {transform_indices = @transform_2, window_bounds = array<i64: 1, 4, 8, 8>}, {transform_indices = @transform_3, window_bounds = array<i64: 1, 4, 8, 8>}]} {
    %c0_i32 = arith.constant 0 : i32
    %0 = arith.cmpi eq, %arg3, %c0_i32 : i32
    %1 = arith.extui %0 : i1 to i32
    %c0_i32_0 = arith.constant 0 : i32
    %2 = arith.cmpi ne, %1, %c0_i32_0 : i32
    scf.if %2 {
      %cst_35 = arith.constant 0xFF800000 : f32
      %36 = vector.broadcast %cst_35 : f32 to vector<4x8x1xf32>
      %c0_36 = arith.constant 0 : index
      %c0_37 = arith.constant 0 : index
      %c0_38 = arith.constant 0 : index
      %37 = vector.load %arg8[%c0_36, %c0_37, %c0_38] : memref<4x8x1xf32, #tpu.memory_space<vmem>>, vector<4x8x1xf32>
      tpu.vector_store %arg8[%c0_36, %c0_37, %c0_38], %36 {strides = array<i32>} : memref<4x8x1xf32, #tpu.memory_space<vmem>>, vector<4x8x1xf32>,
      %cst_39 = arith.constant 0.000000e+00 : f32
      %38 = vector.broadcast %cst_39 : f32 to vector<4x8x1xf32>
      %c0_40 = arith.constant 0 : index
      %c0_41 = arith.constant 0 : index
      %c0_42 = arith.constant 0 : index
      %39 = vector.load %arg9[%c0_40, %c0_41, %c0_42] : memref<4x8x1xf32, #tpu.memory_space<vmem>>, vector<4x8x1xf32>
      tpu.vector_store %arg9[%c0_40, %c0_41, %c0_42], %38 {strides = array<i32>} : memref<4x8x1xf32, #tpu.memory_space<vmem>>, vector<4x8x1xf32>,
      %cst_43 = arith.constant 0.000000e+00 : f32
      %40 = vector.broadcast %cst_43 : f32 to vector<4x8x8xf32>
      %c0_44 = arith.constant 0 : index
      %c0_45 = arith.constant 0 : index
      %c0_46 = arith.constant 0 : index
      %41 = vector.load %arg10[%c0_44, %c0_45, %c0_46] : memref<4x8x8xf32, #tpu.memory_space<vmem>>, vector<4x8x8xf32>
      tpu.vector_store %arg10[%c0_44, %c0_45, %c0_46], %40 {strides = array<i32>} : memref<4x8x8xf32, #tpu.memory_space<vmem>>, vector<4x8x8xf32>,
    } else {
    }
    %c0 = arith.constant 0 : index
    %c0_1 = arith.constant 0 : index
    %c0_2 = arith.constant 0 : index
    %c0_3 = arith.constant 0 : index
    %3 = vector.load %arg4[%c0, %c0_1, %c0_2, %c0_3] : memref<1x4x8x8xbf16, #tpu.memory_space<vmem>>, vector<1x4x8x8xbf16>
    %4 = vector.shape_cast %3 : vector<1x4x8x8xbf16> to vector<4x8x8xbf16>
    %c0_4 = arith.constant 0 : index
    %c0_5 = arith.constant 0 : index
    %c0_6 = arith.constant 0 : index
    %c0_7 = arith.constant 0 : index
    %5 = vector.load %arg5[%c0_4, %c0_5, %c0_6, %c0_7] : memref<1x4x8x8xbf16, #tpu.memory_space<vmem>>, vector<1x4x8x8xbf16>
    %6 = vector.shape_cast %5 : vector<1x4x8x8xbf16> to vector<4x8x8xbf16>
    "tpu.trace_start"() <{level = 10 : i32, message = "hqd,hkd->hqk"}> : () -> ()
    %cst = arith.constant dense<0.000000e+00> : vector<4x8x8xf32>
    %7 = tpu.matmul %4, %6, %cst {dimension_numbers = #tpu.dot_dimension_numbers<[2], [2], [1], [1], [0, 0, 0, 1, 1, 1], [0], [0]>} : vector<4x8x8xbf16>, vector<4x8x8xbf16>, vector<4x8x8xf32> -> vector<4x8x8xf32>
    "tpu.trace_stop"() : () -> ()
    %c0_8 = arith.constant 0 : index
    %c0_9 = arith.constant 0 : index
    %c0_10 = arith.constant 0 : index
    %8 = vector.load %arg8[%c0_8, %c0_9, %c0_10] : memref<4x8x1xf32, #tpu.memory_space<vmem>>, vector<4x8x1xf32>
    %cst_11 = arith.constant dense<0xFF800000> : vector<4x8xf32>
    %9 = vector.multi_reduction <maximumf>, %7, %cst_11 [2] : vector<4x8x8xf32> to vector<4x8xf32>
    %10 = vector.shape_cast %9 : vector<4x8xf32> to vector<4x8x1xf32>
    %11 = arith.maximumf %8, %10 : vector<4x8x1xf32>
    %12 = arith.subf %8, %11 : vector<4x8x1xf32>
    %13 = math.exp %12 : vector<4x8x1xf32>
    %14 = vector.broadcast %11 : vector<4x8x1xf32> to vector<4x8x8xf32>
    %15 = arith.subf %7, %14 : vector<4x8x8xf32>
    %16 = math.exp %15 : vector<4x8x8xf32>
    %c0_12 = arith.constant 0 : index
    %c0_13 = arith.constant 0 : index
    %c0_14 = arith.constant 0 : index
    %17 = vector.load %arg9[%c0_12, %c0_13, %c0_14] : memref<4x8x1xf32, #tpu.memory_space<vmem>>, vector<4x8x1xf32>
    %18 = arith.mulf %13, %17 : vector<4x8x1xf32>
    %cst_15 = arith.constant dense<0.000000e+00> : vector<4x8xf32>
    %19 = vector.multi_reduction <add>, %16, %cst_15 [2] : vector<4x8x8xf32> to vector<4x8xf32>
    %20 = vector.shape_cast %19 : vector<4x8xf32> to vector<4x8x1xf32>
    %21 = arith.addf %18, %20 : vector<4x8x1xf32>
    %c0_16 = arith.constant 0 : index
    %c0_17 = arith.constant 0 : index
    %c0_18 = arith.constant 0 : index
    %22 = vector.load %arg9[%c0_16, %c0_17, %c0_18] : memref<4x8x1xf32, #tpu.memory_space<vmem>>, vector<4x8x1xf32>
    tpu.vector_store %arg9[%c0_16, %c0_17, %c0_18], %21 {strides = array<i32>} : memref<4x8x1xf32, #tpu.memory_space<vmem>>, vector<4x8x1xf32>,
    %c0_19 = arith.constant 0 : index
    %c0_20 = arith.constant 0 : index
    %c0_21 = arith.constant 0 : index
    %23 = vector.load %arg10[%c0_19, %c0_20, %c0_21] : memref<4x8x8xf32, #tpu.memory_space<vmem>>, vector<4x8x8xf32>
    %24 = vector.broadcast %13 : vector<4x8x1xf32> to vector<4x8x8xf32>
    %25 = arith.mulf %24, %23 : vector<4x8x8xf32>
    %26 = arith.truncf %16 : vector<4x8x8xf32> to vector<4x8x8xbf16>
    %c0_22 = arith.constant 0 : index
    %c0_23 = arith.constant 0 : index
    %c0_24 = arith.constant 0 : index
    %c0_25 = arith.constant 0 : index
    %27 = vector.load %arg6[%c0_22, %c0_23, %c0_24, %c0_25] : memref<1x4x8x8xbf16, #tpu.memory_space<vmem>>, vector<1x4x8x8xbf16>
    %28 = vector.shape_cast %27 : vector<1x4x8x8xbf16> to vector<4x8x8xbf16>
    "tpu.trace_start"() <{level = 10 : i32, message = "hqk,hkd->hqd"}> : () -> ()
    %cst_26 = arith.constant dense<0.000000e+00> : vector<4x8x8xf32>
    %29 = tpu.matmul %26, %28, %cst_26 {dimension_numbers = #tpu.dot_dimension_numbers<[2], [1], [1], [2], [0, 0, 0, 1, 1, 2], [0], [0]>} : vector<4x8x8xbf16>, vector<4x8x8xbf16>, vector<4x8x8xf32> -> vector<4x8x8xf32>
    "tpu.trace_stop"() : () -> ()
    %30 = arith.addf %25, %29 : vector<4x8x8xf32>
    %c0_27 = arith.constant 0 : index
    %c0_28 = arith.constant 0 : index
    %c0_29 = arith.constant 0 : index
    %31 = vector.load %arg10[%c0_27, %c0_28, %c0_29] : memref<4x8x8xf32, #tpu.memory_space<vmem>>, vector<4x8x8xf32>
    tpu.vector_store %arg10[%c0_27, %c0_28, %c0_29], %30 {strides = array<i32>} : memref<4x8x8xf32, #tpu.memory_space<vmem>>, vector<4x8x8xf32>,
    %c0_30 = arith.constant 0 : index
    %c0_31 = arith.constant 0 : index
    %c0_32 = arith.constant 0 : index
    %32 = vector.load %arg8[%c0_30, %c0_31, %c0_32] : memref<4x8x1xf32, #tpu.memory_space<vmem>>, vector<4x8x1xf32>
    tpu.vector_store %arg8[%c0_30, %c0_31, %c0_32], %11 {strides = array<i32>} : memref<4x8x1xf32, #tpu.memory_space<vmem>>, vector<4x8x1xf32>,
    %c0_i32_33 = arith.constant 0 : i32
    %33 = arith.cmpi eq, %arg3, %c0_i32_33 : i32
    %34 = arith.extui %33 : i1 to i32
    %c0_i32_34 = arith.constant 0 : i32
    %35 = arith.cmpi ne, %34, %c0_i32_34 : i32
    scf.if %35 {
      %c0_35 = arith.constant 0 : index
      %c0_36 = arith.constant 0 : index
      %c0_37 = arith.constant 0 : index
      %36 = vector.load %arg10[%c0_35, %c0_36, %c0_37] : memref<4x8x8xf32, #tpu.memory_space<vmem>>, vector<4x8x8xf32>
      %c0_38 = arith.constant 0 : index
      %c0_39 = arith.constant 0 : index
      %c0_40 = arith.constant 0 : index
      %37 = vector.load %arg9[%c0_38, %c0_39, %c0_40] : memref<4x8x1xf32, #tpu.memory_space<vmem>>, vector<4x8x1xf32>
      %38 = tpu.reciprocal %37 {approx = true} : vector<4x8x1xf32> -> vector<4x8x1xf32>
      %39 = vector.broadcast %38 : vector<4x8x1xf32> to vector<4x8x8xf32>
      %40 = arith.mulf %36, %39 : vector<4x8x8xf32>
      %41 = arith.truncf %40 : vector<4x8x8xf32> to vector<4x8x8xbf16>
      %c0_41 = arith.constant 0 : index
      %c0_42 = arith.constant 0 : index
      %c0_43 = arith.constant 0 : index
      %c0_44 = arith.constant 0 : index
      %42 = vector.load %arg7[%c0_41, %c0_42, %c0_43, %c0_44] : memref<1x4x8x8xbf16, #tpu.memory_space<vmem>>, vector<1x4x8x8xbf16>
      %43 = vector.shape_cast %42 : vector<1x4x8x8xbf16> to vector<4x8x8xbf16>
      %44 = vector.shape_cast %41 : vector<4x8x8xbf16> to vector<1x4x8x8xbf16>
      tpu.vector_store %arg7[%c0_41, %c0_42, %c0_43, %c0_44], %44 {strides = array<i32>} : memref<1x4x8x8xbf16, #tpu.memory_space<vmem>>, vector<1x4x8x8xbf16>,
    } else {
    }
    return
  }
  func.func @transform_0(%arg0: i32, %arg1: i32, %arg2: i32, %arg3: i32) -> (i32, i32, i32, i32) {
    %c0_i32 = arith.constant 0 : i32
    %c0_i32_0 = arith.constant 0 : i32
    return %arg0, %arg1, %arg2, %c0_i32 : i32, i32, i32, i32
  }
  func.func @transform_1(%arg0: i32, %arg1: i32, %arg2: i32, %arg3: i32) -> (i32, i32, i32, i32) {
    %c0_i32 = arith.constant 0 : i32
    %c0_i32_0 = arith.constant 0 : i32
    return %arg0, %arg1, %arg3, %c0_i32 : i32, i32, i32, i32
  }
  func.func @transform_2(%arg0: i32, %arg1: i32, %arg2: i32, %arg3: i32) -> (i32, i32, i32, i32) {
    %c0_i32 = arith.constant 0 : i32
    %c0_i32_0 = arith.constant 0 : i32
    return %arg0, %arg1, %arg3, %c0_i32 : i32, i32, i32, i32
  }
  func.func @transform_3(%arg0: i32, %arg1: i32, %arg2: i32, %arg3: i32) -> (i32, i32, i32, i32) {
    %c0_i32 = arith.constant 0 : i32
    %c0_i32_0 = arith.constant 0 : i32
    return %arg0, %arg1, %arg2, %c0_i32 : i32, i32, i32, i32
  }
}

module attributes {stable_mosaic.version = 11 : i64} {
  func.func @_ln_mlp_kernel(%arg0: i32, %arg1: i32, %arg2: memref<16x32xf32, #tpu.memory_space<vmem>>, %arg3: memref<1x32xf32, #tpu.memory_space<vmem>>, %arg4: memref<1x32xf32, #tpu.memory_space<vmem>>, %arg5: memref<32x128xbf16, #tpu.memory_space<vmem>>, %arg6: memref<1x128xf32, #tpu.memory_space<vmem>>, %arg7: memref<128x32xbf16, #tpu.memory_space<vmem>>, %arg8: memref<1x32xf32, #tpu.memory_space<vmem>>, %arg9: memref<16x32xf32, #tpu.memory_space<vmem>>, %arg10: memref<16x32xbf16, #tpu.memory_space<vmem>>) attributes {dimension_semantics = [#tpu.dimension_semantics<parallel>, #tpu.dimension_semantics<arbitrary>], iteration_bounds = array<i64: 1, 1>, scalar_prefetch = 0 : i64, scratch_operands = 1 : i64, tpu.core_type = #tpu.core_type<tc>, window_params = [{transform_indices = @transform_0, window_bounds = array<i64: 16, 32>}, {pipeline_mode = #tpu.pipeline_mode<synchronous>, transform_indices = @transform_1, window_bounds = array<i64: 1, 32>}, {pipeline_mode = #tpu.pipeline_mode<synchronous>, transform_indices = @transform_2, window_bounds = array<i64: 1, 32>}, {transform_indices = @transform_3, window_bounds = array<i64: 32, 128>}, {transform_indices = @transform_4, window_bounds = array<i64: 1, 128>}, {transform_indices = @transform_5, window_bounds = array<i64: 128, 32>}, {pipeline_mode = #tpu.pipeline_mode<synchronous>, transform_indices = @transform_6, window_bounds = array<i64: 1, 32>}, {transform_indices = @transform_7, window_bounds = array<i64: 16, 32>}]} {
    %c0_i32 = arith.constant 0 : i32
    %0 = arith.cmpi eq, %arg1, %c0_i32 : i32
    %1 = arith.extui %0 : i1 to i32
    %c0_i32_0 = arith.constant 0 : i32
    %2 = arith.cmpi ne, %1, %c0_i32_0 : i32
    scf.if %2 {
      %c0_28 = arith.constant 0 : index
      %c0_29 = arith.constant 0 : index
      %55 = vector.load %arg2[%c0_28, %c0_29] : memref<16x32xf32, #tpu.memory_space<vmem>>, vector<16x32xf32>
      %c0_30 = arith.constant 0 : index
      %c0_31 = arith.constant 0 : index
      %56 = vector.load %arg3[%c0_30, %c0_31] : memref<1x32xf32, #tpu.memory_space<vmem>>, vector<1x32xf32>
      %c0_32 = arith.constant 0 : index
      %c0_33 = arith.constant 0 : index
      %57 = vector.load %arg4[%c0_32, %c0_33] : memref<1x32xf32, #tpu.memory_space<vmem>>, vector<1x32xf32>
      %cst_34 = arith.constant dense<0.000000e+00> : vector<16xf32>
      %58 = vector.multi_reduction <add>, %55, %cst_34 [1] : vector<16x32xf32> to vector<16xf32>
      %59 = vector.shape_cast %58 : vector<16xf32> to vector<16x1xf32>
      %cst_35 = arith.constant 3.200000e+01 : f32
      %60 = vector.broadcast %cst_35 : f32 to vector<16x1xf32>
      %61 = arith.divf %59, %60 : vector<16x1xf32>
      %62 = vector.broadcast %61 : vector<16x1xf32> to vector<16x32xf32>
      %63 = arith.subf %55, %62 : vector<16x32xf32>
      %64 = arith.mulf %63, %63 : vector<16x32xf32>
      %cst_36 = arith.constant dense<0.000000e+00> : vector<16xf32>
      %65 = vector.multi_reduction <add>, %64, %cst_36 [1] : vector<16x32xf32> to vector<16xf32>
      %66 = vector.shape_cast %65 : vector<16xf32> to vector<16x1xf32>
      %cst_37 = arith.constant 3.200000e+01 : f32
      %67 = vector.broadcast %cst_37 : f32 to vector<16x1xf32>
      %68 = arith.divf %66, %67 : vector<16x1xf32>
      %cst_38 = arith.constant 9.99999974E-6 : f32
      %69 = vector.broadcast %cst_38 : f32 to vector<16x1xf32>
      %70 = arith.addf %68, %69 : vector<16x1xf32>
      %71 = math.rsqrt %70 : vector<16x1xf32>
      %72 = vector.broadcast %71 : vector<16x1xf32> to vector<16x32xf32>
      %73 = arith.mulf %63, %72 : vector<16x32xf32>
      %74 = vector.broadcast %56 : vector<1x32xf32> to vector<16x32xf32>
      %75 = arith.mulf %73, %74 : vector<16x32xf32>
      %76 = vector.broadcast %57 : vector<1x32xf32> to vector<16x32xf32>
      %77 = arith.addf %75, %76 : vector<16x32xf32>
      %78 = arith.truncf %77 : vector<16x32xf32> to vector<16x32xbf16>
      %c0_39 = arith.constant 0 : index
      %c0_40 = arith.constant 0 : index
      %79 = vector.load %arg10[%c0_39, %c0_40] : memref<16x32xbf16, #tpu.memory_space<vmem>>, vector<16x32xbf16>
      tpu.vector_store %arg10[%c0_39, %c0_40], %78 {strides = array<i32>} : memref<16x32xbf16, #tpu.memory_space<vmem>>, vector<16x32xbf16>,
      %c0_41 = arith.constant 0 : index
      %c0_42 = arith.constant 0 : index
      %80 = vector.load %arg8[%c0_41, %c0_42] : memref<1x32xf32, #tpu.memory_space<vmem>>, vector<1x32xf32>
      %81 = vector.broadcast %80 : vector<1x32xf32> to vector<16x32xf32>
      %82 = arith.addf %55, %81 : vector<16x32xf32>
      %c0_43 = arith.constant 0 : index
      %c0_44 = arith.constant 0 : index
      %83 = vector.load %arg9[%c0_43, %c0_44] : memref<16x32xf32, #tpu.memory_space<vmem>>, vector<16x32xf32>
      tpu.vector_store %arg9[%c0_43, %c0_44], %82 {strides = array<i32>} : memref<16x32xf32, #tpu.memory_space<vmem>>, vector<16x32xf32>,
    } else {
    }
    %c0 = arith.constant 0 : index
    %c0_1 = arith.constant 0 : index
    %3 = vector.load %arg10[%c0, %c0_1] : memref<16x32xbf16, #tpu.memory_space<vmem>>, vector<16x32xbf16>
    %c0_2 = arith.constant 0 : index
    %c0_3 = arith.constant 0 : index
    %4 = vector.load %arg5[%c0_2, %c0_3] : memref<32x128xbf16, #tpu.memory_space<vmem>>, vector<32x128xbf16>
    %cst = arith.constant dense<0.000000e+00> : vector<16x128xf32>
    %5 = tpu.matmul %3, %4, %cst {dimension_numbers = #tpu.dot_dimension_numbers<[1], [0], [0], [1], [0, 0, 1, 1], [], []>} : vector<16x32xbf16>, vector<32x128xbf16>, vector<16x128xf32> -> vector<16x128xf32>
    %c0_4 = arith.constant 0 : index
    %c0_5 = arith.constant 0 : index
    %6 = vector.load %arg6[%c0_4, %c0_5] : memref<1x128xf32, #tpu.memory_space<vmem>>, vector<1x128xf32>
    %7 = vector.broadcast %6 : vector<1x128xf32> to vector<16x128xf32>
    %8 = arith.addf %5, %7 : vector<16x128xf32>
    %cst_6 = arith.constant 5.000000e-01 : f32
    %9 = vector.broadcast %cst_6 : f32 to vector<16x128xf32>
    %10 = arith.mulf %9, %8 : vector<16x128xf32>
    %cst_7 = arith.constant 0.707106769 : f32
    %11 = vector.broadcast %cst_7 : f32 to vector<16x128xf32>
    %12 = arith.mulf %8, %11 : vector<16x128xf32>
    %cst_8 = arith.constant 0.000000e+00 : f32
    %13 = vector.broadcast %cst_8 : f32 to vector<16x128xf32>
    %14 = arith.cmpf oge, %12, %13 : vector<16x128xf32>
    %cst_9 = arith.constant 1.000000e+00 : f32
    %cst_10 = arith.constant -1.000000e+00 : f32
    %15 = vector.broadcast %cst_9 : f32 to vector<16x128xf32>
    %16 = vector.broadcast %cst_10 : f32 to vector<16x128xf32>
    %17 = arith.select %14, %15, %16 : vector<16x128xi1>, vector<16x128xf32>
    %18 = math.absf %12 : vector<16x128xf32>
    %cst_11 = arith.constant 0.327591091 : f32
    %19 = vector.broadcast %cst_11 : f32 to vector<16x128xf32>
    %20 = arith.mulf %19, %18 : vector<16x128xf32>
    %cst_12 = arith.constant 1.000000e+00 : f32
    %21 = vector.broadcast %cst_12 : f32 to vector<16x128xf32>
    %22 = arith.addf %21, %20 : vector<16x128xf32>
    %23 = tpu.reciprocal %22 {approx = true} : vector<16x128xf32> -> vector<16x128xf32>
    %cst_13 = arith.constant 1.06140542 : f32
    %24 = vector.broadcast %cst_13 : f32 to vector<16x128xf32>
    %25 = arith.mulf %24, %23 : vector<16x128xf32>
    %cst_14 = arith.constant -1.45315206 : f32
    %26 = vector.broadcast %cst_14 : f32 to vector<16x128xf32>
    %27 = arith.addf %25, %26 : vector<16x128xf32>
    %28 = arith.mulf %27, %23 : vector<16x128xf32>
    %cst_15 = arith.constant 1.42141378 : f32
    %29 = vector.broadcast %cst_15 : f32 to vector<16x128xf32>
    %30 = arith.addf %28, %29 : vector<16x128xf32>
    %31 = arith.mulf %30, %23 : vector<16x128xf32>
    %cst_16 = arith.constant -0.284496725 : f32
    %32 = vector.broadcast %cst_16 : f32 to vector<16x128xf32>
    %33 = arith.addf %31, %32 : vector<16x128xf32>
    %34 = arith.mulf %33, %23 : vector<16x128xf32>
    %cst_17 = arith.constant 0.254829586 : f32
    %35 = vector.broadcast %cst_17 : f32 to vector<16x128xf32>
    %36 = arith.addf %34, %35 : vector<16x128xf32>
    %37 = arith.mulf %36, %23 : vector<16x128xf32>
    %cst_18 = arith.constant 0.000000e+00 : f32
    %38 = vector.broadcast %cst_18 : f32 to vector<16x128xf32>
    %39 = arith.subf %38, %18 : vector<16x128xf32>
    %40 = arith.mulf %39, %18 : vector<16x128xf32>
    %41 = math.exp %40 : vector<16x128xf32>
    %42 = arith.mulf %37, %41 : vector<16x128xf32>
    %cst_19 = arith.constant 1.000000e+00 : f32
    %43 = vector.broadcast %cst_19 : f32 to vector<16x128xf32>
    %44 = arith.subf %43, %42 : vector<16x128xf32>
    %45 = arith.mulf %17, %44 : vector<16x128xf32>
    %cst_20 = arith.constant 1.000000e+00 : f32
    %46 = vector.broadcast %cst_20 : f32 to vector<16x128xf32>
    %47 = arith.addf %46, %45 : vector<16x128xf32>
    %48 = arith.mulf %10, %47 : vector<16x128xf32>
    %c0_21 = arith.constant 0 : index
    %c0_22 = arith.constant 0 : index
    %49 = vector.load %arg9[%c0_21, %c0_22] : memref<16x32xf32, #tpu.memory_space<vmem>>, vector<16x32xf32>
    %50 = arith.truncf %48 : vector<16x128xf32> to vector<16x128xbf16>
    %c0_23 = arith.constant 0 : index
    %c0_24 = arith.constant 0 : index
    %51 = vector.load %arg7[%c0_23, %c0_24] : memref<128x32xbf16, #tpu.memory_space<vmem>>, vector<128x32xbf16>
    %cst_25 = arith.constant dense<0.000000e+00> : vector<16x32xf32>
    %52 = tpu.matmul %50, %51, %cst_25 {dimension_numbers = #tpu.dot_dimension_numbers<[1], [0], [0], [1], [0, 0, 1, 1], [], []>} : vector<16x128xbf16>, vector<128x32xbf16>, vector<16x32xf32> -> vector<16x32xf32>
    %53 = arith.addf %49, %52 : vector<16x32xf32>
    %c0_26 = arith.constant 0 : index
    %c0_27 = arith.constant 0 : index
    %54 = vector.load %arg9[%c0_26, %c0_27] : memref<16x32xf32, #tpu.memory_space<vmem>>, vector<16x32xf32>
    tpu.vector_store %arg9[%c0_26, %c0_27], %53 {strides = array<i32>} : memref<16x32xf32, #tpu.memory_space<vmem>>, vector<16x32xf32>,
    return
  }
  func.func @transform_0(%arg0: i32, %arg1: i32) -> (i32, i32) {
    %c0_i32 = arith.constant 0 : i32
    %c0_i32_0 = arith.constant 0 : i32
    return %arg0, %c0_i32 : i32, i32
  }
  func.func @transform_1(%arg0: i32, %arg1: i32) -> (i32, i32) {
    %c0_i32 = arith.constant 0 : i32
    %c0_i32_0 = arith.constant 0 : i32
    %c0_i32_1 = arith.constant 0 : i32
    return %c0_i32, %c0_i32_0 : i32, i32
  }
  func.func @transform_2(%arg0: i32, %arg1: i32) -> (i32, i32) {
    %c0_i32 = arith.constant 0 : i32
    %c0_i32_0 = arith.constant 0 : i32
    %c0_i32_1 = arith.constant 0 : i32
    return %c0_i32, %c0_i32_0 : i32, i32
  }
  func.func @transform_3(%arg0: i32, %arg1: i32) -> (i32, i32) {
    %c0_i32 = arith.constant 0 : i32
    %c0_i32_0 = arith.constant 0 : i32
    return %c0_i32, %arg1 : i32, i32
  }
  func.func @transform_4(%arg0: i32, %arg1: i32) -> (i32, i32) {
    %c0_i32 = arith.constant 0 : i32
    %c0_i32_0 = arith.constant 0 : i32
    return %c0_i32, %arg1 : i32, i32
  }
  func.func @transform_5(%arg0: i32, %arg1: i32) -> (i32, i32) {
    %c0_i32 = arith.constant 0 : i32
    %c0_i32_0 = arith.constant 0 : i32
    return %arg1, %c0_i32 : i32, i32
  }
  func.func @transform_6(%arg0: i32, %arg1: i32) -> (i32, i32) {
    %c0_i32 = arith.constant 0 : i32
    %c0_i32_0 = arith.constant 0 : i32
    %c0_i32_1 = arith.constant 0 : i32
    return %c0_i32, %c0_i32_0 : i32, i32
  }
  func.func @transform_7(%arg0: i32, %arg1: i32) -> (i32, i32) {
    %c0_i32 = arith.constant 0 : i32
    %c0_i32_0 = arith.constant 0 : i32
    return %arg0, %c0_i32 : i32, i32
  }
}

</mosaic_0001>

<llo_original>
// kernel: gpt3_block_forward.6
$region0: #{gpt3_block_forward.6}
  #allocation0 [shape = 'u32[]', space=smem, size = 0x4, offset = 0x4, fixed_abs, tag = 'smem constant byte address 0x4 - core index']
  #allocation1 [shape = 'u32[144,128]{1,0:T(1,128)}', space=vmem, size = 0x12000, scoped, tag = 'internal scratch']
  %s0 = inlined_call_operand.hbm [shape: f32[16,32], index: 0, kind: input, shape index: {}]
  %s1 = inlined_call_operand.hbm [shape: bf16[16,32], index: 1, kind: input, shape index: {}]
  %s2 = inlined_call_operand.hbm [shape: bf16[32,32], index: 2, kind: input, shape index: {}]
  %s3 = inlined_call_operand.hbm [shape: f32[1,32], index: 3, kind: input, shape index: {}]
  %s4 = inlined_call_operand.hbm [shape: f32[16,32], index: 4, kind: output, shape index: {}]
  %s5 = sld [smem:[#allocation0]]
  $region46: #{gpt3_block_forward.6} parent=0
    _
  %s7 = ssub.s32 1, %s5
  %s8 = scalar_select 0, %s7, %s5
  $region1: #{gpt3_block_forward.6} parent=0
    #allocation2 [shape = 'u8[8192]{0}', space=vmem, size = 0x2000, scoped, tag = 'input window, operand 0, single buffered']
    #allocation3 [shape = 's32[1]{0}', space=sflag, size = 0x4, scoped, tag = 'scoped memory for gpt3_block_forward.6']
    #allocation4 [shape = 's32[1]{0}', space=sflag, size = 0x4, scoped, tag = 'scoped memory for gpt3_block_forward.6']
    #allocation5 [shape = 'u8[4096]{0}', space=vmem, size = 0x1000, scoped, tag = 'input window, operand 1, single buffered']
    #allocation6 [shape = 's32[1]{0}', space=sflag, size = 0x4, scoped, tag = 'scoped memory for gpt3_block_forward.6']
    #allocation7 [shape = 'u8[8192]{0}', space=vmem, size = 0x2000, scoped, tag = 'input window, operand 2, single buffered']
    #allocation8 [shape = 'u8[512]{0}', space=vmem, size = 0x400, scoped, tag = 'input window, operand 3, single buffered']
    #allocation9 [shape = 's32[1]{0}', space=sflag, size = 0x4, scoped, tag = 'scoped memory for gpt3_block_forward.6']
    #allocation10 [shape = 'u8[8192]{0}', space=vmem, size = 0x2000, scoped, tag = 'output window, operand 0, single buffered']
    %9 = vsyncpa [#allocation3], 0
    %10 = vsyncpa [#allocation6], 0
    %11 = vsyncpa [#allocation9], 0
    %12 = vsyncpa [#allocation4], 0
    // Predicated region
    $region2: #{gpt3_block_forward.6} parent=1 // pred_check
      _
    $region3: #{gpt3_block_forward.6} parent=1 // pred_check_branch
      %14 = sbr.rel (0) target = $region5
    $region4: #{gpt3_block_forward.6} parent=1 // pred_region
      %s16 = ssub.s32 256, 256
      %17 = vsyncadd [#allocation3], %s16
      %s18 = sshll.u32 [#allocation2], 4
      %s19 = int_to_ptr.vmem [resolvable:$true] %s18
      %24 = dma.hbm_to_vmem [thread:$0]  %s0, 256, %s19, [#allocation3], 128, 128, 8
    $region5: #{gpt3_block_forward.6} parent=1 // pred_fallthru
      _
    // Predicated region
    $region6: #{gpt3_block_forward.6} parent=1 // pred_check
      _
    $region7: #{gpt3_block_forward.6} parent=1 // pred_check_branch
      %26 = sbr.rel (0) target = $region9
    $region8: #{gpt3_block_forward.6} parent=1 // pred_region
      %s28 = ssub.s32 128, 128
      %29 = vsyncadd [#allocation6], %s28
      %s30 = sshll.u32 [#allocation5], 4
      %s31 = int_to_ptr.vmem [resolvable:$true] %s30
      %36 = dma.hbm_to_vmem [thread:$0]  %s1, 128, %s31, [#allocation6], 64, 64, 4
    $region9: #{gpt3_block_forward.6} parent=1 // pred_fallthru
      _
    // Predicated region
    $region10: #{gpt3_block_forward.6} parent=1 // pred_check
      _
    $region11: #{gpt3_block_forward.6} parent=1 // pred_check_branch
      %38 = sbr.rel (0) target = $region13
    $region12: #{gpt3_block_forward.6} parent=1 // pred_region
      %s40 = ssub.s32 256, 256
      %41 = vsyncadd [#allocation6], %s40
      %s42 = sshll.u32 [#allocation7], 4
      %s43 = int_to_ptr.vmem [resolvable:$true] %s42
      %48 = dma.hbm_to_vmem [thread:$0]  %s2, 256, %s43, [#allocation6], 64, 64, 4
    $region13: #{gpt3_block_forward.6} parent=1 // pred_fallthru
      _
    // Predicated region
    $region14: #{gpt3_block_forward.6} parent=1 // pred_check
      _
    $region15: #{gpt3_block_forward.6} parent=1 // pred_check_branch
      %50 = sbr.rel (0) target = $region17
    $region16: #{gpt3_block_forward.6} parent=1 // pred_region
      %s52 = ssub.s32 16, 16
      %53 = vsyncadd [#allocation9], %s52
      %s55 = sshll.u32 [#allocation8], 4
      %s56 = int_to_ptr.vmem [resolvable:$true] %s55
      %58 = dma.hbm_to_vmem [thread:$0]  %s3, 16, %s56, [#allocation9]
    $region17: #{gpt3_block_forward.6} parent=1 // pred_fallthru
      _
    // Predicated region
    $region18: #{gpt3_block_forward.6} parent=1 // pred_check
      _
    $region19: #{gpt3_block_forward.6} parent=1 // pred_check_branch
      %60 = sbr.rel (0) target = $region21
    $region20: #{gpt3_block_forward.6} parent=1 // pred_region
      %61 = dma.done [#allocation3], 256
    $region21: #{gpt3_block_forward.6} parent=1 // pred_fallthru
      _
    // Predicated region
    $region22: #{gpt3_block_forward.6} parent=1 // pred_check
      _
    $region23: #{gpt3_block_forward.6} parent=1 // pred_check_branch
      %63 = sbr.rel (0) target = $region25
    $region24: #{gpt3_block_forward.6} parent=1 // pred_region
      %64 = dma.done [#allocation6], 128
    $region25: #{gpt3_block_forward.6} parent=1 // pred_fallthru
      _
    // Predicated region
    $region26: #{gpt3_block_forward.6} parent=1 // pred_check
      _
    $region27: #{gpt3_block_forward.6} parent=1 // pred_check_branch
      %66 = sbr.rel (0) target = $region29
    $region28: #{gpt3_block_forward.6} parent=1 // pred_region
      %67 = dma.done [#allocation6], 256
    $region29: #{gpt3_block_forward.6} parent=1 // pred_fallthru
      _
    // Predicated region
    $region30: #{gpt3_block_forward.6} parent=1 // pred_check
      _
    $region31: #{gpt3_block_forward.6} parent=1 // pred_check_branch
      %69 = sbr.rel (0) target = $region33
    $region32: #{gpt3_block_forward.6} parent=1 // pred_region
      %70 = dma.done [#allocation9], 16
    $region33: #{gpt3_block_forward.6} parent=1 // pred_fallthru
      _
    %p72 = scmp.eq.s32.totalorder 0, 0
    // Predicated region
    $region34: #{gpt3_block_forward.6} parent=1 // pred_check
      %p73 = pneg %p72
    $region35: #{gpt3_block_forward.6} parent=1 // pred_check_branch
      %75 = sbr.rel (%p73) target = $region37
    $region36: #{gpt3_block_forward.6} parent=1 // pred_region
      %v76 = vld [vmem:[#allocation2] sm:$0xff]
      %v77 = vld [vmem:[#allocation2 + $0x8] sm:$0xff]
      %v78 = vld [vmem:[#allocation8] sm:$0x1]
      %v80 = vlaneseq
      %v81 = vshrl.u32 %v80, 7
      %v82 = vsub.s32 0, %v81
      %v83 = vrot.slane %v78, %v82
      %v85 = vadd.f32 %v76, %v83
      %v86 = vadd.f32 %v77, %v83
      %vm87 = vcmask 261120
      %88 = vst.msk [vmem:[#allocation10] sm:$0xff] %vm87, %v85
      %89 = vst.msk [vmem:[#allocation10 + $0x8] sm:$0xff] %vm87, %v86
    $region37: #{gpt3_block_forward.6} parent=1 // pred_fallthru
      _
    %v90 = vld [vmem:[#allocation10] sm:$0xff]
    %v91 = vld [vmem:[#allocation10 + $0x8] sm:$0xff]
    %v92 = vld [vmem:[#allocation5] sm:$0xf]
    %v93 = vld [vmem:[#allocation5 + $0x4] sm:$0xf]
    %v94 = vld [vmem:[#allocation7] sm:$0xf]
    %v95 = vld [vmem:[#allocation7 + $0x4] sm:$0xf]
    %v96 = vld [vmem:[#allocation7 + $0x8] sm:$0xf]
    %v97 = vld [vmem:[#allocation7 + $0xc] sm:$0xf]
    %v100 = vunpack.c.l.b16 %v92
    %v101 = vunpack.c.l.b16 %v93
    %v102 = vpack.c.b16 %v101, %v100
    %v107 = vunpack.c.l.b16 %v94
    %v108 = vunpack.c.l.b16 %v95
    %v109 = vunpack.c.l.b16 %v96
    %v110 = vunpack.c.l.b16 %v97
    %v111 = vpack.c.b16 %v108, %v107
    %v112 = vpack.c.b16 %v110, %v109
    %vm115 = vcmask 261120
    %v117 = vsel %vm115, %v102, 0
    %119 = vmatprep.subr.bf16.mxu0 0
    %120 = vmatpush1.bf16.msra.mxu0 %v111
    %121 = vmatprep.subr.bf16.mxu0 0
    %122 = vmatpush1.bf16.msra.mxu0 %v112
    %123 = vmatprep.subr.bf16.mxu0 0
    %124 = vmatpush1.bf16.msra.mxu0 0
    %125 = vmatprep.subr.bf16.mxu0 0
    %126 = vmatpush1.bf16.msra.mxu0 0
    %127 = vmatprep.subr.bf16.mxu0 0
    %128 = vmatpush1.bf16.msra.mxu0 0
    %129 = vmatprep.subr.bf16.mxu0 0
    %130 = vmatpush1.bf16.msra.mxu0 0
    %131 = vmatprep.subr.bf16.mxu0 0
    %132 = vmatpush1.bf16.msra.mxu0 0
    %133 = vmatprep.subr.bf16.mxu0 0
    %134 = vmatpush1.bf16.msra.mxu0 0
    %135 = vmatprep.subr.bf16.mxu0 0
    %136 = vmatpush1.bf16.msra.mxu0 0
    %137 = vmatprep.subr.bf16.mxu0 0
    %138 = vmatpush1.bf16.msra.mxu0 0
    %139 = vmatprep.subr.bf16.mxu0 0
    %140 = vmatpush1.bf16.msra.mxu0 0
    %141 = vmatprep.subr.bf16.mxu0 0
    %142 = vmatpush1.bf16.msra.mxu0 0
    %143 = vmatprep.subr.bf16.mxu0 0
    %144 = vmatpush1.bf16.msra.mxu0 0
    %145 = vmatprep.subr.bf16.mxu0 0
    %146 = vmatpush1.bf16.msra.mxu0 0
    %147 = vmatprep.subr.bf16.mxu0 0
    %148 = vmatpush1.bf16.msra.mxu0 0
    %149 = vmatprep.subr.bf16.mxu0 0
    %150 = vmatpush1.bf16.msra.mxu0 0
    %151 = vmatprep.mubr.bf16.mxu0 0
    %152 = vmatmul.mubr.bf16.gmra.mrb[0].mxu0 %v117
    %v153 = vpop.f32.mrb[0].mxu0
    %v154 = vadd.f32 0.0, %v153
    %v155 = vpop.f32.mrb[0].mxu0
    %v156 = vpop.f32.mrb[0].mxu0
    %v157 = vadd.f32 0.0, %v156
    %v158 = vpop.f32.mrb[0].mxu0
    %159 = vdwg.mxu0
    %v160 = vadd.f32 %v90, %v154
    %v161 = vadd.f32 %v91, %v157
    %162 = vst.msk [vmem:[#allocation10] sm:$0xff] %vm115, %v160
    %163 = vst.msk [vmem:[#allocation10 + $0x8] sm:$0xff] %vm115, %v161
    // Predicated region
    $region38: #{gpt3_block_forward.6} parent=1 // pred_check
      _
    $region39: #{gpt3_block_forward.6} parent=1 // pred_check_branch
      %165 = sbr.rel (0) target = $region41
    $region40: #{gpt3_block_forward.6} parent=1 // pred_region
      %s167 = ssub.s32 256, 256
      %168 = vsyncadd [#allocation4], %s167
      %s169 = sshll.u32 [#allocation10], 4
      %s170 = int_to_ptr.vmem [resolvable:$true] %s169
      %175 = dma.vmem_to_hbm [thread:$0]  %s170, 256, %s4, [#allocation4], 128, 128, 8
    $region41: #{gpt3_block_forward.6} parent=1 // pred_fallthru
      _
    // Predicated region
    $region42: #{gpt3_block_forward.6} parent=1 // pred_check
      _
    $region43: #{gpt3_block_forward.6} parent=1 // pred_check_branch
      %177 = sbr.rel (0) target = $region45
    $region44: #{gpt3_block_forward.6} parent=1 // pred_region
      %178 = dma.done [#allocation4], 256
    $region45: #{gpt3_block_forward.6} parent=1 // pred_fallthru
      _
    %179 = vsyncpa [#allocation3], 1
    %180 = vsyncpa [#allocation6], 1
    %181 = vsyncpa [#allocation9], 1
    %182 = vsyncpa [#allocation4], 1

// kernel: gpt3_block_forward.4
$region0: #{gpt3_block_forward.4}
  #allocation0 [shape = 'u32[]', space=smem, size = 0x4, offset = 0x4, fixed_abs, tag = 'smem constant byte address 0x4 - core index']
  #allocation1 [shape = 'u32[144,128]{1,0:T(1,128)}', space=vmem, size = 0x12000, scoped, tag = 'internal scratch']
  %s0 = inlined_call_operand.hbm [shape: f32[16,32], index: 0, kind: input, shape index: {}]
  %s1 = inlined_call_operand.hbm [shape: f32[1,32], index: 1, kind: input, shape index: {}]
  %s2 = inlined_call_operand.hbm [shape: f32[1,32], index: 2, kind: input, shape index: {}]
  %s3 = inlined_call_operand.hbm [shape: bf16[32,32], index: 3, kind: input, shape index: {}]
  %s4 = inlined_call_operand.hbm [shape: f32[1,32], index: 4, kind: input, shape index: {}]
  %s5 = inlined_call_operand.hbm [shape: bf16[32,32], index: 5, kind: input, shape index: {}]
  %s6 = inlined_call_operand.hbm [shape: f32[1,32], index: 6, kind: input, shape index: {}]
  %s7 = inlined_call_operand.hbm [shape: bf16[32,32], index: 7, kind: input, shape index: {}]
  %s8 = inlined_call_operand.hbm [shape: f32[1,32], index: 8, kind: input, shape index: {}]
  %s9 = inlined_call_operand.hbm [shape: bf16[16,32], index: 9, kind: output, shape index: {0}]
  %s10 = inlined_call_operand.hbm [shape: bf16[16,32], index: 10, kind: output, shape index: {1}]
  %s11 = inlined_call_operand.hbm [shape: bf16[16,32], index: 11, kind: output, shape index: {2}]
  %12 = xla_tuple %s9, %s10, %s11
  %s13 = sld [smem:[#allocation0]]
  $region98: #{gpt3_block_forward.4} parent=0
    _
  %s15 = ssub.s32 1, %s13
  %s16 = scalar_select 0, %s15, %s13
  $region1: #{gpt3_block_forward.4} parent=0
    #allocation2 [shape = 'u8[8192]{0}', space=vmem, size = 0x2000, scoped, tag = 'input window, operand 0, single buffered']
    #allocation3 [shape = 's32[1]{0}', space=sflag, size = 0x4, scoped, tag = 'scoped memory for gpt3_block_forward.4']
    #allocation4 [shape = 's32[1]{0}', space=sflag, size = 0x4, scoped, tag = 'scoped memory for gpt3_block_forward.4']
    #allocation5 [shape = 'u8[512]{0}', space=vmem, size = 0x400, scoped, tag = 'input window, operand 1, single buffered']
    #allocation6 [shape = 's32[1]{0}', space=sflag, size = 0x4, scoped, tag = 'scoped memory for gpt3_block_forward.4']
    #allocation7 [shape = 'u8[512]{0}', space=vmem, size = 0x400, scoped, tag = 'input window, operand 2, single buffered']
    #allocation8 [shape = 'u8[8192]{0}', space=vmem, size = 0x2000, scoped, tag = 'input window, operand 3, single buffered']
    #allocation9 [shape = 's32[1]{0}', space=sflag, size = 0x4, scoped, tag = 'scoped memory for gpt3_block_forward.4']
    #allocation10 [shape = 'u8[512]{0}', space=vmem, size = 0x400, scoped, tag = 'input window, operand 4, single buffered']
    #allocation11 [shape = 'u8[8192]{0}', space=vmem, size = 0x2000, scoped, tag = 'input window, operand 5, single buffered']
    #allocation12 [shape = 's32[1]{0}', space=sflag, size = 0x4, scoped, tag = 'scoped memory for gpt3_block_forward.4']
    #allocation13 [shape = 'u8[512]{0}', space=vmem, size = 0x400, scoped, tag = 'input window, operand 6, single buffered']
    #allocation14 [shape = 'u8[8192]{0}', space=vmem, size = 0x2000, scoped, tag = 'input window, operand 7, single buffered']
    #allocation15 [shape = 's32[1]{0}', space=sflag, size = 0x4, scoped, tag = 'scoped memory for gpt3_block_forward.4']
    #allocation16 [shape = 'u8[512]{0}', space=vmem, size = 0x400, scoped, tag = 'input window, operand 8, single buffered']
    #allocation17 [shape = 'u8[4096]{0}', space=vmem, size = 0x1000, scoped, tag = 'output window, operand 0, single buffered']
    #allocation18 [shape = 'u8[4096]{0}', space=vmem, size = 0x1000, scoped, tag = 'output window, operand 1, single buffered']
    #allocation19 [shape = 's32[1]{0}', space=sflag, size = 0x4, scoped, tag = 'scoped memory for gpt3_block_forward.4']
    #allocation20 [shape = 'u8[4096]{0}', space=vmem, size = 0x1000, scoped, tag = 'output window, operand 2, single buffered']
    %17 = vsyncpa [#allocation3], 0
    %18 = vsyncpa [#allocation6], 0
    %19 = vsyncpa [#allocation9], 0
    %20 = vsyncpa [#allocation12], 0
    %21 = vsyncpa [#allocation15], 0
    %22 = vsyncpa [#allocation4], 0
    %23 = vsyncpa [#allocation19], 0
    // Predicated region
    $region2: #{gpt3_block_forward.4} parent=1 // pred_check
      _
    $region3: #{gpt3_block_forward.4} parent=1 // pred_check_branch
      %25 = sbr.rel (0) target = $region5
    $region4: #{gpt3_block_forward.4} parent=1 // pred_region
      %s27 = ssub.s32 256, 256
      %28 = vsyncadd [#allocation3], %s27
      %s29 = sshll.u32 [#allocation2], 4
      %s30 = int_to_ptr.vmem [resolvable:$true] %s29
      %35 = dma.hbm_to_vmem [thread:$0]  %s0, 256, %s30, [#allocation3], 128, 128, 8
    $region5: #{gpt3_block_forward.4} parent=1 // pred_fallthru
      _
    // Predicated region
    $region6: #{gpt3_block_forward.4} parent=1 // pred_check
      _
    $region7: #{gpt3_block_forward.4} parent=1 // pred_check_branch
      %37 = sbr.rel (0) target = $region9
    $region8: #{gpt3_block_forward.4} parent=1 // pred_region
      %s39 = ssub.s32 16, 16
      %40 = vsyncadd [#allocation6], %s39
      %s42 = sshll.u32 [#allocation5], 4
      %s43 = int_to_ptr.vmem [resolvable:$true] %s42
      %45 = dma.hbm_to_vmem [thread:$0]  %s1, 16, %s43, [#allocation6]
    $region9: #{gpt3_block_forward.4} parent=1 // pred_fallthru
      _
    // Predicated region
    $region10: #{gpt3_block_forward.4} parent=1 // pred_check
      _
    $region11: #{gpt3_block_forward.4} parent=1 // pred_check_branch
      %47 = sbr.rel (0) target = $region13
    $region12: #{gpt3_block_forward.4} parent=1 // pred_region
      %s49 = ssub.s32 16, 16
      %50 = vsyncadd [#allocation6], %s49
      %s52 = sshll.u32 [#allocation7], 4
      %s53 = int_to_ptr.vmem [resolvable:$true] %s52
      %55 = dma.hbm_to_vmem [thread:$0]  %s2, 16, %s53, [#allocation6]
    $region13: #{gpt3_block_forward.4} parent=1 // pred_fallthru
      _
    // Predicated region
    $region14: #{gpt3_block_forward.4} parent=1 // pred_check
      _
    $region15: #{gpt3_block_forward.4} parent=1 // pred_check_branch
      %57 = sbr.rel (0) target = $region17
    $region16: #{gpt3_block_forward.4} parent=1 // pred_region
      %s59 = ssub.s32 256, 256
      %60 = vsyncadd [#allocation9], %s59
      %s61 = sshll.u32 [#allocation8], 4
      %s62 = int_to_ptr.vmem [resolvable:$true] %s61
      %67 = dma.hbm_to_vmem [thread:$0]  %s3, 256, %s62, [#allocation9], 64, 64, 4
    $region17: #{gpt3_block_forward.4} parent=1 // pred_fallthru
      _
    // Predicated region
    $region18: #{gpt3_block_forward.4} parent=1 // pred_check
      _
    $region19: #{gpt3_block_forward.4} parent=1 // pred_check_branch
      %69 = sbr.rel (0) target = $region21
    $region20: #{gpt3_block_forward.4} parent=1 // pred_region
      %s71 = ssub.s32 16, 16
      %72 = vsyncadd [#allocation9], %s71
      %s74 = sshll.u32 [#allocation10], 4
      %s75 = int_to_ptr.vmem [resolvable:$true] %s74
      %77 = dma.hbm_to_vmem [thread:$0]  %s4, 16, %s75, [#allocation9]
    $region21: #{gpt3_block_forward.4} parent=1 // pred_fallthru
      _
    // Predicated region
    $region22: #{gpt3_block_forward.4} parent=1 // pred_check
      _
    $region23: #{gpt3_block_forward.4} parent=1 // pred_check_branch
      %79 = sbr.rel (0) target = $region25
    $region24: #{gpt3_block_forward.4} parent=1 // pred_region
      %s81 = ssub.s32 256, 256
      %82 = vsyncadd [#allocation12], %s81
      %s83 = sshll.u32 [#allocation11], 4
      %s84 = int_to_ptr.vmem [resolvable:$true] %s83
      %89 = dma.hbm_to_vmem [thread:$0]  %s5, 256, %s84, [#allocation12], 64, 64, 4
    $region25: #{gpt3_block_forward.4} parent=1 // pred_fallthru
      _
    // Predicated region
    $region26: #{gpt3_block_forward.4} parent=1 // pred_check
      _
    $region27: #{gpt3_block_forward.4} parent=1 // pred_check_branch
      %91 = sbr.rel (0) target = $region29
    $region28: #{gpt3_block_forward.4} parent=1 // pred_region
      %s93 = ssub.s32 16, 16
      %94 = vsyncadd [#allocation12], %s93
      %s96 = sshll.u32 [#allocation13], 4
      %s97 = int_to_ptr.vmem [resolvable:$true] %s96
      %99 = dma.hbm_to_vmem [thread:$0]  %s6, 16, %s97, [#allocation12]
    $region29: #{gpt3_block_forward.4} parent=1 // pred_fallthru
      _
    // Predicated region
    $region30: #{gpt3_block_forward.4} parent=1 // pred_check
      _
    $region31: #{gpt3_block_forward.4} parent=1 // pred_check_branch
      %101 = sbr.rel (0) target = $region33
    $region32: #{gpt3_block_forward.4} parent=1 // pred_region
      %s103 = ssub.s32 256, 256
      %104 = vsyncadd [#allocation15], %s103
      %s105 = sshll.u32 [#allocation14], 4
      %s106 = int_to_ptr.vmem [resolvable:$true] %s105
      %111 = dma.hbm_to_vmem [thread:$0]  %s7, 256, %s106, [#allocation15], 64, 64, 4
    $region33: #{gpt3_block_forward.4} parent=1 // pred_fallthru
      _
    // Predicated region
    $region34: #{gpt3_block_forward.4} parent=1 // pred_check
      _
    $region35: #{gpt3_block_forward.4} parent=1 // pred_check_branch
      %113 = sbr.rel (0) target = $region37
    $region36: #{gpt3_block_forward.4} parent=1 // pred_region
      %s115 = ssub.s32 16, 16
      %116 = vsyncadd [#allocation15], %s115
      %s118 = sshll.u32 [#allocation16], 4
      %s119 = int_to_ptr.vmem [resolvable:$true] %s118
      %121 = dma.hbm_to_vmem [thread:$0]  %s8, 16, %s119, [#allocation15]
    $region37: #{gpt3_block_forward.4} parent=1 // pred_fallthru
      _
    // Predicated region
    $region38: #{gpt3_block_forward.4} parent=1 // pred_check
      _
    $region39: #{gpt3_block_forward.4} parent=1 // pred_check_branch
      %123 = sbr.rel (0) target = $region41
    $region40: #{gpt3_block_forward.4} parent=1 // pred_region
      %124 = dma.done [#allocation3], 256
    $region41: #{gpt3_block_forward.4} parent=1 // pred_fallthru
      _
    // Predicated region
    $region42: #{gpt3_block_forward.4} parent=1 // pred_check
      _
    $region43: #{gpt3_block_forward.4} parent=1 // pred_check_branch
      %126 = sbr.rel (0) target = $region45
    $region44: #{gpt3_block_forward.4} parent=1 // pred_region
      %127 = dma.done [#allocation6], 16
    $region45: #{gpt3_block_forward.4} parent=1 // pred_fallthru
      _
    // Predicated region
    $region46: #{gpt3_block_forward.4} parent=1 // pred_check
      _
    $region47: #{gpt3_block_forward.4} parent=1 // pred_check_branch
      %129 = sbr.rel (0) target = $region49
    $region48: #{gpt3_block_forward.4} parent=1 // pred_region
      %130 = dma.done [#allocation6], 16
    $region49: #{gpt3_block_forward.4} parent=1 // pred_fallthru
      _
    // Predicated region
    $region50: #{gpt3_block_forward.4} parent=1 // pred_check
      _
    $region51: #{gpt3_block_forward.4} parent=1 // pred_check_branch
      %132 = sbr.rel (0) target = $region53
    $region52: #{gpt3_block_forward.4} parent=1 // pred_region
      %133 = dma.done [#allocation9], 256
    $region53: #{gpt3_block_forward.4} parent=1 // pred_fallthru
      _
    // Predicated region
    $region54: #{gpt3_block_forward.4} parent=1 // pred_check
      _
    $region55: #{gpt3_block_forward.4} parent=1 // pred_check_branch
      %135 = sbr.rel (0) target = $region57
    $region56: #{gpt3_block_forward.4} parent=1 // pred_region
      %136 = dma.done [#allocation9], 16
    $region57: #{gpt3_block_forward.4} parent=1 // pred_fallthru
      _
    // Predicated region
    $region58: #{gpt3_block_forward.4} parent=1 // pred_check
      _
    $region59: #{gpt3_block_forward.4} parent=1 // pred_check_branch
      %138 = sbr.rel (0) target = $region61
    $region60: #{gpt3_block_forward.4} parent=1 // pred_region
      %139 = dma.done [#allocation12], 256
    $region61: #{gpt3_block_forward.4} parent=1 // pred_fallthru
      _
    // Predicated region
    $region62: #{gpt3_block_forward.4} parent=1 // pred_check
      _
    $region63: #{gpt3_block_forward.4} parent=1 // pred_check_branch
      %141 = sbr.rel (0) target = $region65
    $region64: #{gpt3_block_forward.4} parent=1 // pred_region
      %142 = dma.done [#allocation12], 16
    $region65: #{gpt3_block_forward.4} parent=1 // pred_fallthru
      _
    // Predicated region
    $region66: #{gpt3_block_forward.4} parent=1 // pred_check
      _
    $region67: #{gpt3_block_forward.4} parent=1 // pred_check_branch
      %144 = sbr.rel (0) target = $region69
    $region68: #{gpt3_block_forward.4} parent=1 // pred_region
      %145 = dma.done [#allocation15], 256
    $region69: #{gpt3_block_forward.4} parent=1 // pred_fallthru
      _
    // Predicated region
    $region70: #{gpt3_block_forward.4} parent=1 // pred_check
      _
    $region71: #{gpt3_block_forward.4} parent=1 // pred_check_branch
      %147 = sbr.rel (0) target = $region73
    $region72: #{gpt3_block_forward.4} parent=1 // pred_region
      %148 = dma.done [#allocation15], 16
    $region73: #{gpt3_block_forward.4} parent=1 // pred_fallthru
      _
    %v150 = vld [vmem:[#allocation2] sm:$0xff]
    %v151 = vld [vmem:[#allocation2 + $0x8] sm:$0xff]
    %v152 = vld [vmem:[#allocation5] sm:$0x1]
    %v153 = vld [vmem:[#allocation7] sm:$0x1]
    %vm154 = vcmask 261120
    %v155 = vsel %vm154, %v150, 0.0
    %156 = vadd.xlane.f32.xlu0 %v155
    %v157 = vpop.xlane.xlu0 %156
    %v158 = vsel %vm154, %v151, 0.0
    %159 = vadd.xlane.f32.xlu0 %v158
    %v160 = vpop.xlane.xlu0 %159
    %v161 = vrcp.pop 32.0
    %v162 = vmul.f32 %v157, %v161
    %v163 = vmul.f32 %v160, %v161
    %v164 = vsub.f32 %v150, %v162
    %v165 = vsub.f32 %v151, %v163
    %v166 = vmul.f32 %v164, %v164
    %v167 = vmul.f32 %v165, %v165
    %v168 = vsel %vm154, %v166, 0.0
    %169 = vadd.xlane.f32.xlu0 %v168
    %v170 = vpop.xlane.xlu0 %169
    %v171 = vsel %vm154, %v167, 0.0
    %172 = vadd.xlane.f32.xlu0 %v171
    %v173 = vpop.xlane.xlu0 %172
    %v174 = vmul.f32 %v170, %v161
    %v175 = vmul.f32 %v173, %v161
    %v176 = vadd.f32 %v174, 1e-05
    %v177 = vadd.f32 %v175, 1e-05
    %v178 = vrsqrt.pop %v176
    %v179 = vrsqrt.pop %v177
    %v180 = vmul.f32 %v164, %v178
    %v181 = vmul.f32 %v165, %v179
    %v183 = vlaneseq
    %v184 = vshrl.u32 %v183, 7
    %v185 = vsub.s32 0, %v184
    %v186 = vrot.slane %v152, %v185
    %v188 = vmul.f32 %v180, %v186
    %v189 = vmul.f32 %v181, %v186
    %v191 = vlaneseq
    %v192 = vshrl.u32 %v191, 7
    %v193 = vsub.s32 0, %v192
    %v194 = vrot.slane %v153, %v193
    %v196 = vadd.f32 %v188, %v194
    %v197 = vadd.f32 %v189, %v194
    %v198 = vpack.c.bf16 %v197, %v196
    %v199 = vld [vmem:[#allocation8] sm:$0xf]
    %v200 = vld [vmem:[#allocation8 + $0x4] sm:$0xf]
    %v201 = vld [vmem:[#allocation8 + $0x8] sm:$0xf]
    %v202 = vld [vmem:[#allocation8 + $0xc] sm:$0xf]
    %v203 = vld [vmem:[#allocation10] sm:$0x1]
    %v205 = vlaneseq
    %v206 = vshrl.u32 %v205, 7
    %v207 = vsub.s32 0, %v206
    %v208 = vrot.slane %v203, %v207
    %v214 = vunpack.c.l.b16 %v199
    %v215 = vunpack.c.l.b16 %v200
    %v216 = vunpack.c.l.b16 %v201
    %v217 = vunpack.c.l.b16 %v202
    %v218 = vpack.c.b16 %v215, %v214
    %v219 = vpack.c.b16 %v217, %v216
    %v223 = vsel %vm154, %v198, 0
    %225 = vmatprep.subr.bf16.mxu0 0
    %226 = vmatpush1.bf16.msra.mxu0 %v218
    %227 = vmatprep.subr.bf16.mxu0 0
    %228 = vmatpush1.bf16.msra.mxu0 %v219
    %229 = vmatprep.subr.bf16.mxu0 0
    %230 = vmatpush1.bf16.msra.mxu0 0
    %231 = vmatprep.subr.bf16.mxu0 0
    %232 = vmatpush1.bf16.msra.mxu0 0
    %233 = vmatprep.subr.bf16.mxu0 0
    %234 = vmatpush1.bf16.msra.mxu0 0
    %235 = vmatprep.subr.bf16.mxu0 0
    %236 = vmatpush1.bf16.msra.mxu0 0
    %237 = vmatprep.subr.bf16.mxu0 0
    %238 = vmatpush1.bf16.msra.mxu0 0
    %239 = vmatprep.subr.bf16.mxu0 0
    %240 = vmatpush1.bf16.msra.mxu0 0
    %241 = vmatprep.subr.bf16.mxu0 0
    %242 = vmatpush1.bf16.msra.mxu0 0
    %243 = vmatprep.subr.bf16.mxu0 0
    %244 = vmatpush1.bf16.msra.mxu0 0
    %245 = vmatprep.subr.bf16.mxu0 0
    %246 = vmatpush1.bf16.msra.mxu0 0
    %247 = vmatprep.subr.bf16.mxu0 0
    %248 = vmatpush1.bf16.msra.mxu0 0
    %249 = vmatprep.subr.bf16.mxu0 0
    %250 = vmatpush1.bf16.msra.mxu0 0
    %251 = vmatprep.subr.bf16.mxu0 0
    %252 = vmatpush1.bf16.msra.mxu0 0
    %253 = vmatprep.subr.bf16.mxu0 0
    %254 = vmatpush1.bf16.msra.mxu0 0
    %255 = vmatprep.subr.bf16.mxu0 0
    %256 = vmatpush1.bf16.msra.mxu0 0
    %257 = vmatprep.mubr.bf16.mxu0 0
    %258 = vmatmul.mubr.bf16.gmra.mrb[0].mxu0 %v223
    %v259 = vpop.f32.mrb[0].mxu0
    %v260 = vadd.f32 %v208, %v259
    %v261 = vpop.f32.mrb[0].mxu0
    %v262 = vpop.f32.mrb[0].mxu0
    %v263 = vadd.f32 %v208, %v262
    %v264 = vpop.f32.mrb[0].mxu0
    %265 = vdwg.mxu0
    %v266 = vpack.c.bf16 %v263, %v260
    %v268 = vunpack.c.l.b16 %v266
    %v269 = vunpack.c.h.b16 %v266
    %v270 = vpack.c.b16 %v268, %v268
    %v271 = vpack.c.b16 %v269, %v269
    %vm274 = vcmask 257024
    %275 = vst.msk [vmem:[#allocation17] sm:$0xf] %vm274, %v270
    %276 = vst.msk [vmem:[#allocation17 + $0x4] sm:$0xf] %vm274, %v271
    %v277 = vld [vmem:[#allocation11] sm:$0xf]
    %v278 = vld [vmem:[#allocation11 + $0x4] sm:$0xf]
    %v279 = vld [vmem:[#allocation11 + $0x8] sm:$0xf]
    %v280 = vld [vmem:[#allocation11 + $0xc] sm:$0xf]
    %v281 = vld [vmem:[#allocation13] sm:$0x1]
    %v283 = vlaneseq
    %v284 = vshrl.u32 %v283, 7
    %v285 = vsub.s32 0, %v284
    %v286 = vrot.slane %v281, %v285
    %v292 = vunpack.c.l.b16 %v277
    %v293 = vunpack.c.l.b16 %v278
    %v294 = vunpack.c.l.b16 %v279
    %v295 = vunpack.c.l.b16 %v280
    %v296 = vpack.c.b16 %v293, %v292
    %v297 = vpack.c.b16 %v295, %v294
    %300 = vmatprep.subr.bf16.mxu0 0
    %301 = vmatpush1.bf16.msra.mxu0 %v296
    %302 = vmatprep.subr.bf16.mxu0 0
    %303 = vmatpush1.bf16.msra.mxu0 %v297
    %304 = vmatprep.subr.bf16.mxu0 0
    %305 = vmatpush1.bf16.msra.mxu0 0
    %306 = vmatprep.subr.bf16.mxu0 0
    %307 = vmatpush1.bf16.msra.mxu0 0
    %308 = vmatprep.subr.bf16.mxu0 0
    %309 = vmatpush1.bf16.msra.mxu0 0
    %310 = vmatprep.subr.bf16.mxu0 0
    %311 = vmatpush1.bf16.msra.mxu0 0
    %312 = vmatprep.subr.bf16.mxu0 0
    %313 = vmatpush1.bf16.msra.mxu0 0
    %314 = vmatprep.subr.bf16.mxu0 0
    %315 = vmatpush1.bf16.msra.mxu0 0
    %316 = vmatprep.subr.bf16.mxu0 0
    %317 = vmatpush1.bf16.msra.mxu0 0
    %318 = vmatprep.subr.bf16.mxu0 0
    %319 = vmatpush1.bf16.msra.mxu0 0
    %320 = vmatprep.subr.bf16.mxu0 0
    %321 = vmatpush1.bf16.msra.mxu0 0
    %322 = vmatprep.subr.bf16.mxu0 0
    %323 = vmatpush1.bf16.msra.mxu0 0
    %324 = vmatprep.subr.bf16.mxu0 0
    %325 = vmatpush1.bf16.msra.mxu0 0
    %326 = vmatprep.subr.bf16.mxu0 0
    %327 = vmatpush1.bf16.msra.mxu0 0
    %328 = vmatprep.subr.bf16.mxu0 0
    %329 = vmatpush1.bf16.msra.mxu0 0
    %330 = vmatprep.subr.bf16.mxu0 0
    %331 = vmatpush1.bf16.msra.mxu0 0
    %332 = vmatprep.mubr.bf16.mxu0 0
    %333 = vmatmul.mubr.bf16.gmra.mrb[0].mxu0 %v223
    %v334 = vpop.f32.mrb[0].mxu0
    %v335 = vadd.f32 %v286, %v334
    %v336 = vpop.f32.mrb[0].mxu0
    %v337 = vpop.f32.mrb[0].mxu0
    %v338 = vadd.f32 %v286, %v337
    %v339 = vpop.f32.mrb[0].mxu0
    %340 = vdwg.mxu0
    %v341 = vpack.c.bf16 %v338, %v335
    %v343 = vunpack.c.l.b16 %v341
    %v344 = vunpack.c.h.b16 %v341
    %v345 = vpack.c.b16 %v343, %v343
    %v346 = vpack.c.b16 %v344, %v344
    %349 = vst.msk [vmem:[#allocation18] sm:$0xf] %vm274, %v345
    %350 = vst.msk [vmem:[#allocation18 + $0x4] sm:$0xf] %vm274, %v346
    %v351 = vld [vmem:[#allocation14] sm:$0xf]
    %v352 = vld [vmem:[#allocation14 + $0x4] sm:$0xf]
    %v353 = vld [vmem:[#allocation14 + $0x8] sm:$0xf]
    %v354 = vld [vmem:[#allocation14 + $0xc] sm:$0xf]
    %v355 = vld [vmem:[#allocation16] sm:$0x1]
    %v357 = vlaneseq
    %v358 = vshrl.u32 %v357, 7
    %v359 = vsub.s32 0, %v358
    %v360 = vrot.slane %v355, %v359
    %v366 = vunpack.c.l.b16 %v351
    %v367 = vunpack.c.l.b16 %v352
    %v368 = vunpack.c.l.b16 %v353
    %v369 = vunpack.c.l.b16 %v354
    %v370 = vpack.c.b16 %v367, %v366
    %v371 = vpack.c.b16 %v369, %v368
    %374 = vmatprep.subr.bf16.mxu0 0
    %375 = vmatpush1.bf16.msra.mxu0 %v370
    %376 = vmatprep.subr.bf16.mxu0 0
    %377 = vmatpush1.bf16.msra.mxu0 %v371
    %378 = vmatprep.subr.bf16.mxu0 0
    %379 = vmatpush1.bf16.msra.mxu0 0
    %380 = vmatprep.subr.bf16.mxu0 0
    %381 = vmatpush1.bf16.msra.mxu0 0
    %382 = vmatprep.subr.bf16.mxu0 0
    %383 = vmatpush1.bf16.msra.mxu0 0
    %384 = vmatprep.subr.bf16.mxu0 0
    %385 = vmatpush1.bf16.msra.mxu0 0
    %386 = vmatprep.subr.bf16.mxu0 0
    %387 = vmatpush1.bf16.msra.mxu0 0
    %388 = vmatprep.subr.bf16.mxu0 0
    %389 = vmatpush1.bf16.msra.mxu0 0
    %390 = vmatprep.subr.bf16.mxu0 0
    %391 = vmatpush1.bf16.msra.mxu0 0
    %392 = vmatprep.subr.bf16.mxu0 0
    %393 = vmatpush1.bf16.msra.mxu0 0
    %394 = vmatprep.subr.bf16.mxu0 0
    %395 = vmatpush1.bf16.msra.mxu0 0
    %396 = vmatprep.subr.bf16.mxu0 0
    %397 = vmatpush1.bf16.msra.mxu0 0
    %398 = vmatprep.subr.bf16.mxu0 0
    %399 = vmatpush1.bf16.msra.mxu0 0
    %400 = vmatprep.subr.bf16.mxu0 0
    %401 = vmatpush1.bf16.msra.mxu0 0
    %402 = vmatprep.subr.bf16.mxu0 0
    %403 = vmatpush1.bf16.msra.mxu0 0
    %404 = vmatprep.subr.bf16.mxu0 0
    %405 = vmatpush1.bf16.msra.mxu0 0
    %406 = vmatprep.mubr.bf16.mxu0 0
    %407 = vmatmul.mubr.bf16.gmra.mrb[0].mxu0 %v223
    %v408 = vpop.f32.mrb[0].mxu0
    %v409 = vadd.f32 %v360, %v408
    %v410 = vpop.f32.mrb[0].mxu0
    %v411 = vpop.f32.mrb[0].mxu0
    %v412 = vadd.f32 %v360, %v411
    %v413 = vpop.f32.mrb[0].mxu0
    %414 = vdwg.mxu0
    %v415 = vpack.c.bf16 %v412, %v409
    %v417 = vunpack.c.l.b16 %v415
    %v418 = vunpack.c.h.b16 %v415
    %v419 = vpack.c.b16 %v417, %v417
    %v420 = vpack.c.b16 %v418, %v418
    %423 = vst.msk [vmem:[#allocation20] sm:$0xf] %vm274, %v419
    %424 = vst.msk [vmem:[#allocation20 + $0x4] sm:$0xf] %vm274, %v420
    // Predicated region
    $region74: #{gpt3_block_forward.4} parent=1 // pred_check
      _
    $region75: #{gpt3_block_forward.4} parent=1 // pred_check_branch
      %426 = sbr.rel (0) target = $region77
    $region76: #{gpt3_block_forward.4} parent=1 // pred_region
      %s428 = ssub.s32 128, 128
      %429 = vsyncadd [#allocation4], %s428
      %s430 = sshll.u32 [#allocation17], 4
      %s431 = int_to_ptr.vmem [resolvable:$true] %s430
      %436 = dma.vmem_to_hbm [thread:$0]  %s431, 128, %s9, [#allocation4], 64, 64, 4
    $region77: #{gpt3_block_forward.4} parent=1 // pred_fallthru
      _
    // Predicated region
    $region78: #{gpt3_block_forward.4} parent=1 // pred_check
      _
    $region79: #{gpt3_block_forward.4} parent=1 // pred_check_branch
      %438 = sbr.rel (0) target = $region81
    $region80: #{gpt3_block_forward.4} parent=1 // pred_region
      %s440 = ssub.s32 128, 128
      %441 = vsyncadd [#allocation19], %s440
      %s442 = sshll.u32 [#allocation18], 4
      %s443 = int_to_ptr.vmem [resolvable:$true] %s442
      %448 = dma.vmem_to_hbm [thread:$0]  %s443, 128, %s10, [#allocation19], 64, 64, 4
    $region81: #{gpt3_block_forward.4} parent=1 // pred_fallthru
      _
    // Predicated region
    $region82: #{gpt3_block_forward.4} parent=1 // pred_check
      _
    $region83: #{gpt3_block_forward.4} parent=1 // pred_check_branch
      %450 = sbr.rel (0) target = $region85
    $region84: #{gpt3_block_forward.4} parent=1 // pred_region
      %s452 = ssub.s32 128, 128
      %453 = vsyncadd [#allocation19], %s452
      %s454 = sshll.u32 [#allocation20], 4
      %s455 = int_to_ptr.vmem [resolvable:$true] %s454
      %460 = dma.vmem_to_hbm [thread:$0]  %s455, 128, %s11, [#allocation19], 64, 64, 4
    $region85: #{gpt3_block_forward.4} parent=1 // pred_fallthru
      _
    // Predicated region
    $region86: #{gpt3_block_forward.4} parent=1 // pred_check
      _
    $region87: #{gpt3_block_forward.4} parent=1 // pred_check_branch
      %462 = sbr.rel (0) target = $region89
    $region88: #{gpt3_block_forward.4} parent=1 // pred_region
      %463 = dma.done [#allocation4], 128
    $region89: #{gpt3_block_forward.4} parent=1 // pred_fallthru
      _
    // Predicated region
    $region90: #{gpt3_block_forward.4} parent=1 // pred_check
      _
    $region91: #{gpt3_block_forward.4} parent=1 // pred_check_branch
      %465 = sbr.rel (0) target = $region93
    $region92: #{gpt3_block_forward.4} parent=1 // pred_region
      %466 = dma.done [#allocation19], 128
    $region93: #{gpt3_block_forward.4} parent=1 // pred_fallthru
      _
    // Predicated region
    $region94: #{gpt3_block_forward.4} parent=1 // pred_check
      _
    $region95: #{gpt3_block_forward.4} parent=1 // pred_check_branch
      %468 = sbr.rel (0) target = $region97
    $region96: #{gpt3_block_forward.4} parent=1 // pred_region
      %469 = dma.done [#allocation19], 128
    $region97: #{gpt3_block_forward.4} parent=1 // pred_fallthru
      _
    %470 = vsyncpa [#allocation3], 1
    %471 = vsyncpa [#allocation6], 1
    %472 = vsyncpa [#allocation9], 1
    %473 = vsyncpa [#allocation12], 1
    %474 = vsyncpa [#allocation15], 1
    %475 = vsyncpa [#allocation4], 1
    %476 = vsyncpa [#allocation19], 1

// kernel: gpt3_block_forward.5
$region0: #{gpt3_block_forward.5}
  #allocation0 [shape = 'u32[]', space=smem, size = 0x4, offset = 0x4, fixed_abs, tag = 'smem constant byte address 0x4 - core index']
  #allocation1 [shape = 'u32[144,128]{1,0:T(1,128)}', space=vmem, size = 0x12000, scoped, tag = 'internal scratch']
  #allocation2 [shape = 'f32[4,8,1]{2,1,0:T(8,128)}', space=vmem, size = 0x4000, scoped, tag = 'scratch operand']
  #allocation3 [shape = 'f32[4,8,1]{2,1,0:T(8,128)}', space=vmem, size = 0x4000, scoped, tag = 'scratch operand']
  #allocation4 [shape = 'f32[4,8,8]{2,1,0:T(8,128)}', space=vmem, size = 0x4000, scoped, tag = 'scratch operand']
  %s0 = inlined_call_operand.hbm [shape: bf16[2,4,8,8], index: 0, kind: input, shape index: {}]
  %s1 = inlined_call_operand.hbm [shape: bf16[2,4,8,8], index: 1, kind: input, shape index: {}]
  %s2 = inlined_call_operand.hbm [shape: bf16[2,4,8,8], index: 2, kind: input, shape index: {}]
  %s3 = inlined_call_operand.hbm [shape: bf16[2,4,8,8], index: 3, kind: output, shape index: {}]
  %s4 = sld [smem:[#allocation0]]
  $region65: #{gpt3_block_forward.5} parent=0
    _
  %s6 = ssub.s32 1, %s4
  %s7 = scalar_select 0, %s6, %s4
  $region1: #{gpt3_block_forward.5} parent=0
    #allocation5 [shape = 'u8[16384]{0}', space=vmem, size = 0x4000, scoped, tag = 'input window, operand 0']
    #allocation6 [shape = 's32[2]{0}', space=sflag, size = 0x8, scoped, tag = 'scoped memory for gpt3_block_forward.5']
    #allocation7 [shape = 's32[2]{0}', space=sflag, size = 0x8, scoped, tag = 'scoped memory for gpt3_block_forward.5']
    #allocation8 [shape = 'u8[16384]{0}', space=vmem, size = 0x4000, scoped, tag = 'input window, operand 1']
    #allocation9 [shape = 's32[2]{0}', space=sflag, size = 0x8, scoped, tag = 'scoped memory for gpt3_block_forward.5']
    #allocation10 [shape = 'u8[16384]{0}', space=vmem, size = 0x4000, scoped, tag = 'input window, operand 2']
    #allocation11 [shape = 'u8[16384]{0}', space=vmem, size = 0x4000, scoped, tag = 'output window, operand 0']
    %8 = vsyncpa [#allocation6], 0
    %s9 = scalar_lea.sflag [#allocation6], 1
    %10 = vsyncpa %s9, 0
    %11 = vsyncpa [#allocation9], 0
    %s12 = scalar_lea.sflag [#allocation9], 1
    %13 = vsyncpa %s12, 0
    %14 = vsyncpa [#allocation7], 0
    %s15 = scalar_lea.sflag [#allocation7], 1
    %16 = vsyncpa %s15, 0
    loop: start=0, step=1, limit=4
    $region2: #{gpt3_block_forward.5} parent=1 // loop_pre_header
      _
    $region3: #{gpt3_block_forward.5} parent=1 // loop_header
      %s18 = sphi 0, %s22
      %p19 = scmp.ge.s32.totalorder %s18, 4
      %s25 = sphi 0, %s51
      %s26 = sphi 0, %s47
      %s27 = sphi 0, %s43
      %s28 = sphi 0, %s39
      %s29 = sphi 0, %s25
      %s30 = sphi 0, %s26
      %s31 = sphi 0, %s27
      %s32 = sphi 0, %s28
      %s33 = sphi 0, %s29
      %s34 = sphi 0, %s30
      %s35 = sphi 0, %s31
      %s36 = sphi 0, %s32
      %s58 = sphi 0, %s60
      %s61 = sphi 0, %s58
      %s62 = sphi 0, %s61
      %s78 = sphi 0, %s62
      %s88 = sphi 0, %s90
      %s91 = sphi 0, %s88
      %s92 = sphi 0, %s91
      %s108 = sphi 0, %s92
      %s118 = sphi 0, %s120
      %s121 = sphi 0, %s118
      %s122 = sphi 0, %s121
      %s138 = sphi 0, %s122
      %s148 = sphi 0, %s150
      %s151 = sphi 0, %s148
      %s152 = sphi 0, %s151
      %s168 = sphi 0, %s152
    $region4: #{gpt3_block_forward.5} parent=1 // loop_header_branch
      %21 = sbr.rel (%p19) target = $region8
    $region5: #{gpt3_block_forward.5} parent=1 // loop_body
      %s23 = ssub.s32 %s18, 1
      %s24 = ssub.s32 %s18, 2
      %s37 = sadd.s32 1, %s28
      %p38 = scmp.ge.s32.totalorder %s37, 1
      %s39 = scalar_select %p38, 0, %s37
      %s40 = sadd.s32 1, %s27
      %s41 = scalar_select %p38, %s40, %s27
      %p42 = scmp.ge.s32.totalorder %s41, 1
      %s43 = scalar_select %p42, 0, %s41
      %s44 = sadd.s32 1, %s26
      %s45 = scalar_select %p42, %s44, %s26
      %p46 = scmp.ge.s32.totalorder %s45, 1
      %s47 = scalar_select %p46, 0, %s45
      %s48 = sadd.s32 1, %s25
      %s49 = scalar_select %p46, %s48, %s25
      %p50 = scmp.ge.s32.totalorder %s49, 2
      %s51 = scalar_select %p50, 0, %s49
      %s52 = ssub.s32 %s25, %s51
      %s53 = ssub.s32 %s26, %s47
      %s54 = sor.u32 %s52, %s53
      %s55 = ssub.s32 %s27, %s43
      %s56 = sor.u32 %s54, %s55
      %p57 = scmp.eq.s32.totalorder %s56, 0
      %s59 = sadd.s32 %s58, 1
      %s60 = scalar_select %p57, %s58, %s59
      %p63 = pneg %p57
      %p64 = scmp.eq.s32.totalorder %s18, 1
      %p65 = por %p63, %p64
      %p66 = scmp.ne.s32.totalorder %s58, %s61
      %p67 = scmp.eq.s32.totalorder %s18, 0
      %p68 = por %p66, %p67
      %p69 = scmp.ne.s32.totalorder %s58, %s61
      %p70 = scmp.eq.s32.totalorder %s23, 1
      %p71 = por %p69, %p70
      %p72 = scmp.ne.s32.totalorder %s61, %s62
      %p73 = scmp.eq.s32.totalorder %s23, 0
      %p74 = por %p72, %p73
      %p75 = scmp.ne.s32.totalorder %s61, %s62
      %p76 = scmp.eq.s32.totalorder %s24, 1
      %p77 = por %p75, %p76
      %p79 = scmp.ne.s32.totalorder %s62, %s78
      %p80 = scmp.eq.s32.totalorder %s24, 0
      %p81 = por %p79, %p80
      %s82 = ssub.s32 %s25, %s51
      %s83 = ssub.s32 %s26, %s47
      %s84 = sor.u32 %s82, %s83
      %s85 = ssub.s32 %s28, %s39
      %s86 = sor.u32 %s84, %s85
      %p87 = scmp.eq.s32.totalorder %s86, 0
      %s89 = sadd.s32 %s88, 1
      %s90 = scalar_select %p87, %s88, %s89
      %p93 = pneg %p87
      %p94 = scmp.eq.s32.totalorder %s18, 1
      %p95 = por %p93, %p94
      %p96 = scmp.ne.s32.totalorder %s88, %s91
      %p97 = scmp.eq.s32.totalorder %s18, 0
      %p98 = por %p96, %p97
      %p99 = scmp.ne.s32.totalorder %s88, %s91
      %p100 = scmp.eq.s32.totalorder %s23, 1
      %p101 = por %p99, %p100
      %p102 = scmp.ne.s32.totalorder %s91, %s92
      %p103 = scmp.eq.s32.totalorder %s23, 0
      %p104 = por %p102, %p103
      %p105 = scmp.ne.s32.totalorder %s91, %s92
      %p106 = scmp.eq.s32.totalorder %s24, 1
      %p107 = por %p105, %p106
      %p109 = scmp.ne.s32.totalorder %s92, %s108
      %p110 = scmp.eq.s32.totalorder %s24, 0
      %p111 = por %p109, %p110
      %s112 = ssub.s32 %s25, %s51
      %s113 = ssub.s32 %s26, %s47
      %s114 = sor.u32 %s112, %s113
      %s115 = ssub.s32 %s28, %s39
      %s116 = sor.u32 %s114, %s115
      %p117 = scmp.eq.s32.totalorder %s116, 0
      %s119 = sadd.s32 %s118, 1
      %s120 = scalar_select %p117, %s118, %s119
      %p123 = pneg %p117
      %p124 = scmp.eq.s32.totalorder %s18, 1
      %p125 = por %p123, %p124
      %p126 = scmp.ne.s32.totalorder %s118, %s121
      %p127 = scmp.eq.s32.totalorder %s18, 0
      %p128 = por %p126, %p127
      %p129 = scmp.ne.s32.totalorder %s118, %s121
      %p130 = scmp.eq.s32.totalorder %s23, 1
      %p131 = por %p129, %p130
      %p132 = scmp.ne.s32.totalorder %s121, %s122
      %p133 = scmp.eq.s32.totalorder %s23, 0
      %p134 = por %p132, %p133
      %p135 = scmp.ne.s32.totalorder %s121, %s122
      %p136 = scmp.eq.s32.totalorder %s24, 1
      %p137 = por %p135, %p136
      %p139 = scmp.ne.s32.totalorder %s122, %s138
      %p140 = scmp.eq.s32.totalorder %s24, 0
      %p141 = por %p139, %p140
      %s142 = ssub.s32 %s25, %s51
      %s143 = ssub.s32 %s26, %s47
      %s144 = sor.u32 %s142, %s143
      %s145 = ssub.s32 %s27, %s43
      %s146 = sor.u32 %s144, %s145
      %p147 = scmp.eq.s32.totalorder %s146, 0
      %s149 = sadd.s32 %s148, 1
      %s150 = scalar_select %p147, %s148, %s149
      %p153 = pneg %p147
      %p154 = scmp.eq.s32.totalorder %s18, 1
      %p155 = por %p153, %p154
      %p156 = scmp.ne.s32.totalorder %s148, %s151
      %p157 = scmp.eq.s32.totalorder %s18, 0
      %p158 = por %p156, %p157
      %p159 = scmp.ne.s32.totalorder %s148, %s151
      %p160 = scmp.eq.s32.totalorder %s23, 1
      %p161 = por %p159, %p160
      %p162 = scmp.ne.s32.totalorder %s151, %s152
      %p163 = scmp.eq.s32.totalorder %s23, 0
      %p164 = por %p162, %p163
      %p165 = scmp.ne.s32.totalorder %s151, %s152
      %p166 = scmp.eq.s32.totalorder %s24, 1
      %p167 = por %p165, %p166
      %p169 = scmp.ne.s32.totalorder %s152, %s168
      %p170 = scmp.eq.s32.totalorder %s24, 0
      %p171 = por %p169, %p170
      %p172 = scmp.le.s32.totalorder 1, %s18
      %p173 = scmp.lt.s32.totalorder %s18, 3
      %p174 = pnand %p172, %p173
      %p175 = pneg %p174
      // Predicated region
      $region9: #{gpt3_block_forward.5} parent=5 // pred_check
        _
      $region10: #{gpt3_block_forward.5} parent=5 // pred_check_branch
        %177 = sbr.rel (%p174) target = $region12
      $region11: #{gpt3_block_forward.5} parent=5 // pred_region
        %s178 = ssub.s32 %s18, 1
      $region12: #{gpt3_block_forward.5} parent=5 // pred_fallthru
        _
      %p179 = scmp.lt.s32.totalorder %s18, 2
      // Predicated region
      $region13: #{gpt3_block_forward.5} parent=5 // pred_check
        %p180 = pneg %p179
      $region14: #{gpt3_block_forward.5} parent=5 // pred_check_branch
        %182 = sbr.rel (%p180) target = $region16
      $region15: #{gpt3_block_forward.5} parent=5 // pred_region
        // Predicated region
        $region17: #{gpt3_block_forward.5} parent=15 // pred_check
          %p183 = pneg %p68
        $region18: #{gpt3_block_forward.5} parent=15 // pred_check_branch
          %185 = sbr.rel (%p183) target = $region20
        $region19: #{gpt3_block_forward.5} parent=15 // pred_region
          %s186 = sand.u32 %s58, 1
          %s187 = scalar_lea.sflag [#allocation6], %s186
          %s188 = sand.u32 %s58, 1
          %s189 = smul.addr %s188, 16
          %s190 = scalar_lea.vmem [#allocation5], %s189
          %s191 = smul.u32 4, %s26
          %s193 = ssub.s32 256, 256
          %194 = vsyncadd %s187, %s193
          %s195 = sadd.s32 %s27, %s191
          %s196 = smul.addr %s25, 4
          %s197 = sadd.s32 %s195, %s196
          %s198 = smul.addr %s197, 64
          %s199 = scalar_lea.hbm %s0, %s198
          %s200 = sshll.u32 %s190, 4
          %s201 = int_to_ptr.vmem [resolvable:$true] %s200
          %206 = dma.hbm_to_vmem [thread:$0]  %s199, 256, %s201, %s187, 64, 64, 4
        $region20: #{gpt3_block_forward.5} parent=15 // pred_fallthru
          _
        // Predicated region
        $region21: #{gpt3_block_forward.5} parent=15 // pred_check
          %p207 = pneg %p98
        $region22: #{gpt3_block_forward.5} parent=15 // pred_check_branch
          %209 = sbr.rel (%p207) target = $region24
        $region23: #{gpt3_block_forward.5} parent=15 // pred_region
          %s210 = sand.u32 %s18, 1
          %s211 = scalar_lea.sflag [#allocation9], %s210
          %s212 = sand.u32 %s88, 1
          %s213 = smul.addr %s212, 16
          %s214 = scalar_lea.vmem [#allocation8], %s213
          %s215 = smul.u32 4, %s26
          %s217 = ssub.s32 256, 256
          %218 = vsyncadd %s211, %s217
          %s219 = sadd.s32 %s28, %s215
          %s220 = smul.addr %s25, 4
          %s221 = sadd.s32 %s219, %s220
          %s222 = smul.addr %s221, 64
          %s223 = scalar_lea.hbm %s1, %s222
          %s224 = sshll.u32 %s214, 4
          %s225 = int_to_ptr.vmem [resolvable:$true] %s224
          %230 = dma.hbm_to_vmem [thread:$0]  %s223, 256, %s225, %s211, 64, 64, 4
        $region24: #{gpt3_block_forward.5} parent=15 // pred_fallthru
          _
        // Predicated region
        $region25: #{gpt3_block_forward.5} parent=15 // pred_check
          %p231 = pneg %p128
        $region26: #{gpt3_block_forward.5} parent=15 // pred_check_branch
          %233 = sbr.rel (%p231) target = $region28
        $region27: #{gpt3_block_forward.5} parent=15 // pred_region
          %s234 = sand.u32 %s18, 1
          %s235 = scalar_lea.sflag [#allocation9], %s234
          %s236 = sand.u32 %s118, 1
          %s237 = smul.addr %s236, 16
          %s238 = scalar_lea.vmem [#allocation10], %s237
          %s239 = smul.u32 4, %s26
          %s241 = ssub.s32 256, 256
          %242 = vsyncadd %s235, %s241
          %s243 = sadd.s32 %s28, %s239
          %s244 = smul.addr %s25, 4
          %s245 = sadd.s32 %s243, %s244
          %s246 = smul.addr %s245, 64
          %s247 = scalar_lea.hbm %s2, %s246
          %s248 = sshll.u32 %s238, 4
          %s249 = int_to_ptr.vmem [resolvable:$true] %s248
          %254 = dma.hbm_to_vmem [thread:$0]  %s247, 256, %s249, %s235, 64, 64, 4
        $region28: #{gpt3_block_forward.5} parent=15 // pred_fallthru
          _
      $region16: #{gpt3_block_forward.5} parent=5 // pred_fallthru
        _
      %p255 = scmp.le.s32.totalorder 1, %s18
      %p256 = scmp.lt.s32.totalorder %s18, 3
      %p257 = pnand %p255, %p256
      %p258 = pneg %p257
      // Predicated region
      $region29: #{gpt3_block_forward.5} parent=5 // pred_check
        _
      $region30: #{gpt3_block_forward.5} parent=5 // pred_check_branch
        %260 = sbr.rel (%p257) target = $region32
      $region31: #{gpt3_block_forward.5} parent=5 // pred_region
        %s261 = ssub.s32 %s18, 1
        %s262 = sand.u32 %s61, 1
        %s263 = scalar_lea.sflag [#allocation6], %s262
        %s264 = sand.u32 %s61, 1
        %s265 = smul.addr %s264, 16
        %s266 = scalar_lea.vmem [#allocation5], %s265
        // Predicated region
        $region33: #{gpt3_block_forward.5} parent=31 // pred_check
          %p267 = pneg %p74
        $region34: #{gpt3_block_forward.5} parent=31 // pred_check_branch
          %269 = sbr.rel (%p267) target = $region36
        $region35: #{gpt3_block_forward.5} parent=31 // pred_region
          %270 = dma.done %s263, 256
        $region36: #{gpt3_block_forward.5} parent=31 // pred_fallthru
          _
        %s271 = sand.u32 %s23, 1
        %s272 = scalar_lea.sflag [#allocation9], %s271
        %s273 = sand.u32 %s91, 1
        %s274 = smul.addr %s273, 16
        %s275 = scalar_lea.vmem [#allocation8], %s274
        // Predicated region
        $region37: #{gpt3_block_forward.5} parent=31 // pred_check
          %p276 = pneg %p104
        $region38: #{gpt3_block_forward.5} parent=31 // pred_check_branch
          %278 = sbr.rel (%p276) target = $region40
        $region39: #{gpt3_block_forward.5} parent=31 // pred_region
          %279 = dma.done %s272, 256
        $region40: #{gpt3_block_forward.5} parent=31 // pred_fallthru
          _
        %s280 = sand.u32 %s23, 1
        %s281 = scalar_lea.sflag [#allocation9], %s280
        %s282 = sand.u32 %s121, 1
        %s283 = smul.addr %s282, 16
        %s284 = scalar_lea.vmem [#allocation10], %s283
        // Predicated region
        $region41: #{gpt3_block_forward.5} parent=31 // pred_check
          %p285 = pneg %p134
        $region42: #{gpt3_block_forward.5} parent=31 // pred_check_branch
          %287 = sbr.rel (%p285) target = $region44
        $region43: #{gpt3_block_forward.5} parent=31 // pred_region
          %288 = dma.done %s281, 256
        $region44: #{gpt3_block_forward.5} parent=31 // pred_fallthru
          _
        %s289 = sand.u32 %s61, 1
        %s290 = scalar_lea.sflag [#allocation6], %s289
        %s291 = sand.u32 %s61, 1
        %s292 = smul.addr %s291, 16
        %s293 = scalar_lea.vmem [#allocation5], %s292
        %p294 = pneg %p74
        %p295 = pneg %p71
        %s296 = sand.u32 %s23, 1
        %s297 = scalar_lea.sflag [#allocation9], %s296
        %s298 = sand.u32 %s91, 1
        %s299 = smul.addr %s298, 16
        %s300 = scalar_lea.vmem [#allocation8], %s299
        %p301 = pneg %p104
        %p302 = pneg %p101
        %s303 = sand.u32 %s23, 1
        %s304 = scalar_lea.sflag [#allocation9], %s303
        %s305 = sand.u32 %s121, 1
        %s306 = smul.addr %s305, 16
        %s307 = scalar_lea.vmem [#allocation10], %s306
        %p308 = pneg %p134
        %p309 = pneg %p131
        %p310 = pneg %p164
        %p311 = pneg %p161
        %s312 = sand.u32 %s151, 1
        %s313 = scalar_lea.sflag [#allocation7], %s312
        %s314 = sand.u32 %s151, 1
        %s315 = smul.addr %s314, 16
        %s316 = scalar_lea.vmem [#allocation11], %s315
        %s317 = smul.u32 4, %s30
        %s318 = smul.u32 4, %s30
        %s319 = smul.u32 4, %s30
        %s320 = smul.u32 4, %s30
        %p322 = scmp.eq.s32.totalorder %s32, 0
        // Predicated region
        $region45: #{gpt3_block_forward.5} parent=31 // pred_check
          %p323 = pneg %p322
        $region46: #{gpt3_block_forward.5} parent=31 // pred_check_branch
          %325 = sbr.rel (%p323) target = $region48
        $region47: #{gpt3_block_forward.5} parent=31 // pred_region
          %vm326 = vcmask 7168
          %327 = vst.msk [vmem:[#allocation2] sm:$0xff] %vm326, -inf
          %328 = vst.msk [vmem:[#allocation2 + $0x8] sm:$0xff] %vm326, -inf
          %329 = vst.msk [vmem:[#allocation2 + $0x10] sm:$0xff] %vm326, -inf
          %330 = vst.msk [vmem:[#allocation2 + $0x18] sm:$0xff] %vm326, -inf
          %331 = vst.msk [vmem:[#allocation3] sm:$0xff] %vm326, 0.0
          %332 = vst.msk [vmem:[#allocation3 + $0x8] sm:$0xff] %vm326, 0.0
          %333 = vst.msk [vmem:[#allocation3 + $0x10] sm:$0xff] %vm326, 0.0
          %334 = vst.msk [vmem:[#allocation3 + $0x18] sm:$0xff] %vm326, 0.0
          %vm335 = vcmask 64512
          %336 = vst.msk [vmem:[#allocation4] sm:$0xff] %vm335, 0.0
          %337 = vst.msk [vmem:[#allocation4 + $0x8] sm:$0xff] %vm335, 0.0
          %338 = vst.msk [vmem:[#allocation4 + $0x10] sm:$0xff] %vm335, 0.0
          %339 = vst.msk [vmem:[#allocation4 + $0x18] sm:$0xff] %vm335, 0.0
        $region48: #{gpt3_block_forward.5} parent=31 // pred_fallthru
          _
        %v340 = vld [vmem:[%s266] sm:$0xf]
        %v341 = vld [vmem:[%s266 + $0x4] sm:$0xf]
        %v342 = vld [vmem:[%s266 + $0x8] sm:$0xf]
        %v343 = vld [vmem:[%s266 + $0xc] sm:$0xf]
        %v344 = vld [vmem:[%s275] sm:$0xf]
        %v345 = vld [vmem:[%s275 + $0x4] sm:$0xf]
        %v346 = vld [vmem:[%s275 + $0x8] sm:$0xf]
        %v347 = vld [vmem:[%s275 + $0xc] sm:$0xf]
        %vm348 = vcmask 64512
        %v350 = vsel %vm348, %v340, 0
        %v353 = vsel %vm348, %v344, 0
        %355 = vmatprep.subr.bf16.mxu0 0
        %356 = vmatpush1.bf16.xpose.msra.mxu0 %v353
        %357 = vmatprep.subr.bf16.mxu0 0
        %358 = vmatpush1.bf16.xpose.msra.mxu0 0
        %359 = vmatprep.subr.bf16.mxu0 0
        %360 = vmatpush1.bf16.xpose.msra.mxu0 0
        %361 = vmatprep.subr.bf16.mxu0 0
        %362 = vmatpush1.bf16.xpose.msra.mxu0 0
        %363 = vmatprep.subr.bf16.mxu0 0
        %364 = vmatpush1.bf16.xpose.msra.mxu0 0
        %365 = vmatprep.subr.bf16.mxu0 0
        %366 = vmatpush1.bf16.xpose.msra.mxu0 0
        %367 = vmatprep.subr.bf16.mxu0 0
        %368 = vmatpush1.bf16.xpose.msra.mxu0 0
        %369 = vmatprep.subr.bf16.mxu0 0
        %370 = vmatpush1.bf16.xpose.msra.mxu0 0
        %371 = vmatprep.subr.bf16.mxu0 0
        %372 = vmatpush1.bf16.xpose.msra.mxu0 0
        %373 = vmatprep.subr.bf16.mxu0 0
        %374 = vmatpush1.bf16.xpose.msra.mxu0 0
        %375 = vmatprep.subr.bf16.mxu0 0
        %376 = vmatpush1.bf16.xpose.msra.mxu0 0
        %377 = vmatprep.subr.bf16.mxu0 0
        %378 = vmatpush1.bf16.xpose.msra.mxu0 0
        %379 = vmatprep.subr.bf16.mxu0 0
        %380 = vmatpush1.bf16.xpose.msra.mxu0 0
        %381 = vmatprep.subr.bf16.mxu0 0
        %382 = vmatpush1.bf16.xpose.msra.mxu0 0
        %383 = vmatprep.subr.bf16.mxu0 0
        %384 = vmatpush1.bf16.xpose.msra.mxu0 0
        %385 = vmatprep.subr.bf16.mxu0 0
        %386 = vmatpush1.bf16.xpose.msra.mxu0 0
        %387 = vmatprep.mubr.bf16.mxu0 0
        %388 = vmatmul.mubr.bf16.gmra.mrb[0].mxu0 %v350
        %v389 = vpop.f32.mrb[0].mxu0
        %v390 = vadd.f32 0.0, %v389
        %v391 = vpop.f32.mrb[0].mxu0
        %v392 = vpop.f32.mrb[0].mxu0
        %v393 = vpop.f32.mrb[0].mxu0
        %394 = vdwg.mxu0
        %v396 = vsel %vm348, %v341, 0
        %v399 = vsel %vm348, %v345, 0
        %401 = vmatprep.subr.bf16.mxu0 0
        %402 = vmatpush1.bf16.xpose.msra.mxu0 %v399
        %403 = vmatprep.subr.bf16.mxu0 0
        %404 = vmatpush1.bf16.xpose.msra.mxu0 0
        %405 = vmatprep.subr.bf16.mxu0 0
        %406 = vmatpush1.bf16.xpose.msra.mxu0 0
        %407 = vmatprep.subr.bf16.mxu0 0
        %408 = vmatpush1.bf16.xpose.msra.mxu0 0
        %409 = vmatprep.subr.bf16.mxu0 0
        %410 = vmatpush1.bf16.xpose.msra.mxu0 0
        %411 = vmatprep.subr.bf16.mxu0 0
        %412 = vmatpush1.bf16.xpose.msra.mxu0 0
        %413 = vmatprep.subr.bf16.mxu0 0
        %414 = vmatpush1.bf16.xpose.msra.mxu0 0
        %415 = vmatprep.subr.bf16.mxu0 0
        %416 = vmatpush1.bf16.xpose.msra.mxu0 0
        %417 = vmatprep.subr.bf16.mxu0 0
        %418 = vmatpush1.bf16.xpose.msra.mxu0 0
        %419 = vmatprep.subr.bf16.mxu0 0
        %420 = vmatpush1.bf16.xpose.msra.mxu0 0
        %421 = vmatprep.subr.bf16.mxu0 0
        %422 = vmatpush1.bf16.xpose.msra.mxu0 0
        %423 = vmatprep.subr.bf16.mxu0 0
        %424 = vmatpush1.bf16.xpose.msra.mxu0 0
        %425 = vmatprep.subr.bf16.mxu0 0
        %426 = vmatpush1.bf16.xpose.msra.mxu0 0
        %427 = vmatprep.subr.bf16.mxu0 0
        %428 = vmatpush1.bf16.xpose.msra.mxu0 0
        %429 = vmatprep.subr.bf16.mxu0 0
        %430 = vmatpush1.bf16.xpose.msra.mxu0 0
        %431 = vmatprep.subr.bf16.mxu0 0
        %432 = vmatpush1.bf16.xpose.msra.mxu0 0
        %433 = vmatprep.mubr.bf16.mxu0 0
        %434 = vmatmul.mubr.bf16.gmra.mrb[0].mxu0 %v396
        %v435 = vpop.f32.mrb[0].mxu0
        %v436 = vadd.f32 0.0, %v435
        %v437 = vpop.f32.mrb[0].mxu0
        %v438 = vpop.f32.mrb[0].mxu0
        %v439 = vpop.f32.mrb[0].mxu0
        %440 = vdwg.mxu0
        %v442 = vsel %vm348, %v342, 0
        %v445 = vsel %vm348, %v346, 0
        %447 = vmatprep.subr.bf16.mxu0 0
        %448 = vmatpush1.bf16.xpose.msra.mxu0 %v445
        %449 = vmatprep.subr.bf16.mxu0 0
        %450 = vmatpush1.bf16.xpose.msra.mxu0 0
        %451 = vmatprep.subr.bf16.mxu0 0
        %452 = vmatpush1.bf16.xpose.msra.mxu0 0
        %453 = vmatprep.subr.bf16.mxu0 0
        %454 = vmatpush1.bf16.xpose.msra.mxu0 0
        %455 = vmatprep.subr.bf16.mxu0 0
        %456 = vmatpush1.bf16.xpose.msra.mxu0 0
        %457 = vmatprep.subr.bf16.mxu0 0
        %458 = vmatpush1.bf16.xpose.msra.mxu0 0
        %459 = vmatprep.subr.bf16.mxu0 0
        %460 = vmatpush1.bf16.xpose.msra.mxu0 0
        %461 = vmatprep.subr.bf16.mxu0 0
        %462 = vmatpush1.bf16.xpose.msra.mxu0 0
        %463 = vmatprep.subr.bf16.mxu0 0
        %464 = vmatpush1.bf16.xpose.msra.mxu0 0
        %465 = vmatprep.subr.bf16.mxu0 0
        %466 = vmatpush1.bf16.xpose.msra.mxu0 0
        %467 = vmatprep.subr.bf16.mxu0 0
        %468 = vmatpush1.bf16.xpose.msra.mxu0 0
        %469 = vmatprep.subr.bf16.mxu0 0
        %470 = vmatpush1.bf16.xpose.msra.mxu0 0
        %471 = vmatprep.subr.bf16.mxu0 0
        %472 = vmatpush1.bf16.xpose.msra.mxu0 0
        %473 = vmatprep.subr.bf16.mxu0 0
        %474 = vmatpush1.bf16.xpose.msra.mxu0 0
        %475 = vmatprep.subr.bf16.mxu0 0
        %476 = vmatpush1.bf16.xpose.msra.mxu0 0
        %477 = vmatprep.subr.bf16.mxu0 0
        %478 = vmatpush1.bf16.xpose.msra.mxu0 0
        %479 = vmatprep.mubr.bf16.mxu0 0
        %480 = vmatmul.mubr.bf16.gmra.mrb[0].mxu0 %v442
        %v481 = vpop.f32.mrb[0].mxu0
        %v482 = vadd.f32 0.0, %v481
        %v483 = vpop.f32.mrb[0].mxu0
        %v484 = vpop.f32.mrb[0].mxu0
        %v485 = vpop.f32.mrb[0].mxu0
        %486 = vdwg.mxu0
        %v488 = vsel %vm348, %v343, 0
        %v491 = vsel %vm348, %v347, 0
        %493 = vmatprep.subr.bf16.mxu0 0
        %494 = vmatpush1.bf16.xpose.msra.mxu0 %v491
        %495 = vmatprep.subr.bf16.mxu0 0
        %496 = vmatpush1.bf16.xpose.msra.mxu0 0
        %497 = vmatprep.subr.bf16.mxu0 0
        %498 = vmatpush1.bf16.xpose.msra.mxu0 0
        %499 = vmatprep.subr.bf16.mxu0 0
        %500 = vmatpush1.bf16.xpose.msra.mxu0 0
        %501 = vmatprep.subr.bf16.mxu0 0
        %502 = vmatpush1.bf16.xpose.msra.mxu0 0
        %503 = vmatprep.subr.bf16.mxu0 0
        %504 = vmatpush1.bf16.xpose.msra.mxu0 0
        %505 = vmatprep.subr.bf16.mxu0 0
        %506 = vmatpush1.bf16.xpose.msra.mxu0 0
        %507 = vmatprep.subr.bf16.mxu0 0
        %508 = vmatpush1.bf16.xpose.msra.mxu0 0
        %509 = vmatprep.subr.bf16.mxu0 0
        %510 = vmatpush1.bf16.xpose.msra.mxu0 0
        %511 = vmatprep.subr.bf16.mxu0 0
        %512 = vmatpush1.bf16.xpose.msra.mxu0 0
        %513 = vmatprep.subr.bf16.mxu0 0
        %514 = vmatpush1.bf16.xpose.msra.mxu0 0
        %515 = vmatprep.subr.bf16.mxu0 0
        %516 = vmatpush1.bf16.xpose.msra.mxu0 0
        %517 = vmatprep.subr.bf16.mxu0 0
        %518 = vmatpush1.bf16.xpose.msra.mxu0 0
        %519 = vmatprep.subr.bf16.mxu0 0
        %520 = vmatpush1.bf16.xpose.msra.mxu0 0
        %521 = vmatprep.subr.bf16.mxu0 0
        %522 = vmatpush1.bf16.xpose.msra.mxu0 0
        %523 = vmatprep.subr.bf16.mxu0 0
        %524 = vmatpush1.bf16.xpose.msra.mxu0 0
        %525 = vmatprep.mubr.bf16.mxu0 0
        %526 = vmatmul.mubr.bf16.gmra.mrb[0].mxu0 %v488
        %v527 = vpop.f32.mrb[0].mxu0
        %v528 = vadd.f32 0.0, %v527
        %v529 = vpop.f32.mrb[0].mxu0
        %v530 = vpop.f32.mrb[0].mxu0
        %v531 = vpop.f32.mrb[0].mxu0
        %532 = vdwg.mxu0
        %v533 = vld [vmem:[#allocation2] sm:$0xff]
        %v534 = vld [vmem:[#allocation2 + $0x8] sm:$0xff]
        %v535 = vld [vmem:[#allocation2 + $0x10] sm:$0xff]
        %v536 = vld [vmem:[#allocation2 + $0x18] sm:$0xff]
        %v537 = vsel %vm348, %v390, -inf
        %538 = vmax.xlane.f32.xlu0 %v537
        %v539 = vpop.xlane.xlu0 %538
        %v540 = vsel %vm348, %v436, -inf
        %541 = vmax.xlane.f32.xlu0 %v540
        %v542 = vpop.xlane.xlu0 %541
        %v543 = vsel %vm348, %v482, -inf
        %544 = vmax.xlane.f32.xlu0 %v543
        %v545 = vpop.xlane.xlu0 %544
        %v546 = vsel %vm348, %v528, -inf
        %547 = vmax.xlane.f32.xlu0 %v546
        %v548 = vpop.xlane.xlu0 %547
        %v549 = vmax.f32 %v533, %v539
        %v550 = vmax.f32 %v534, %v542
        %v551 = vmax.f32 %v535, %v545
        %v552 = vmax.f32 %v536, %v548
        %v553 = vsub.f32 %v533, %v549
        %v554 = vsub.f32 %v534, %v550
        %v555 = vsub.f32 %v535, %v551
        %v556 = vsub.f32 %v536, %v552
        %v557 = vmul.f32 %v553, 1.442695
        %v558 = vpow.pop %v557
        %v559 = vmul.f32 %v554, 1.442695
        %v560 = vpow.pop %v559
        %v561 = vmul.f32 %v555, 1.442695
        %v562 = vpow.pop %v561
        %v563 = vmul.f32 %v556, 1.442695
        %v564 = vpow.pop %v563
        %566 = vset.pattern.permute.xlu0 0
        %567 = vperm.xlu0 %566, %v549
        %v568 = vpop.permute.xlu0 %567
        %571 = vset.pattern.permute.xlu0 0
        %572 = vperm.xlu0 %571, %v550
        %v573 = vpop.permute.xlu0 %572
        %576 = vset.pattern.permute.xlu0 0
        %577 = vperm.xlu0 %576, %v551
        %v578 = vpop.permute.xlu0 %577
        %581 = vset.pattern.permute.xlu0 0
        %582 = vperm.xlu0 %581, %v552
        %v583 = vpop.permute.xlu0 %582
        %v585 = vsub.f32 %v390, %v568
        %v586 = vsub.f32 %v436, %v573
        %v587 = vsub.f32 %v482, %v578
        %v588 = vsub.f32 %v528, %v583
        %v589 = vmul.f32 %v585, 1.442695
        %v590 = vpow.pop %v589
        %v591 = vmul.f32 %v586, 1.442695
        %v592 = vpow.pop %v591
        %v593 = vmul.f32 %v587, 1.442695
        %v594 = vpow.pop %v593
        %v595 = vmul.f32 %v588, 1.442695
        %v596 = vpow.pop %v595
        %v597 = vld [vmem:[#allocation3] sm:$0xff]
        %v598 = vld [vmem:[#allocation3 + $0x8] sm:$0xff]
        %v599 = vld [vmem:[#allocation3 + $0x10] sm:$0xff]
        %v600 = vld [vmem:[#allocation3 + $0x18] sm:$0xff]
        %v601 = vmul.f32 %v558, %v597
        %v602 = vmul.f32 %v560, %v598
        %v603 = vmul.f32 %v562, %v599
        %v604 = vmul.f32 %v564, %v600
        %v605 = vsel %vm348, %v590, 0.0
        %606 = vadd.xlane.f32.xlu0 %v605
        %v607 = vpop.xlane.xlu0 %606
        %v608 = vsel %vm348, %v592, 0.0
        %609 = vadd.xlane.f32.xlu0 %v608
        %v610 = vpop.xlane.xlu0 %609
        %v611 = vsel %vm348, %v594, 0.0
        %612 = vadd.xlane.f32.xlu0 %v611
        %v613 = vpop.xlane.xlu0 %612
        %v614 = vsel %vm348, %v596, 0.0
        %615 = vadd.xlane.f32.xlu0 %v614
        %v616 = vpop.xlane.xlu0 %615
        %v617 = vadd.f32 %v601, %v607
        %v618 = vadd.f32 %v602, %v610
        %v619 = vadd.f32 %v603, %v613
        %v620 = vadd.f32 %v604, %v616
        %vm621 = vcmask 7168
        %622 = vst.msk [vmem:[#allocation3] sm:$0xff] %vm621, %v617
        %623 = vst.msk [vmem:[#allocation3 + $0x8] sm:$0xff] %vm621, %v618
        %624 = vst.msk [vmem:[#allocation3 + $0x10] sm:$0xff] %vm621, %v619
        %625 = vst.msk [vmem:[#allocation3 + $0x18] sm:$0xff] %vm621, %v620
        %v626 = vld [vmem:[#allocation4] sm:$0xff]
        %v627 = vld [vmem:[#allocation4 + $0x8] sm:$0xff]
        %v628 = vld [vmem:[#allocation4 + $0x10] sm:$0xff]
        %v629 = vld [vmem:[#allocation4 + $0x18] sm:$0xff]
        %631 = vset.pattern.permute.xlu0 0
        %632 = vperm.xlu0 %631, %v558
        %v633 = vpop.permute.xlu0 %632
        %636 = vset.pattern.permute.xlu0 0
        %637 = vperm.xlu0 %636, %v560
        %v638 = vpop.permute.xlu0 %637
        %641 = vset.pattern.permute.xlu0 0
        %642 = vperm.xlu0 %641, %v562
        %v643 = vpop.permute.xlu0 %642
        %646 = vset.pattern.permute.xlu0 0
        %647 = vperm.xlu0 %646, %v564
        %v648 = vpop.permute.xlu0 %647
        %v650 = vmul.f32 %v633, %v626
        %v651 = vmul.f32 %v638, %v627
        %v652 = vmul.f32 %v643, %v628
        %v653 = vmul.f32 %v648, %v629
        %v654 = vpack.c.bf16 %v590, %v590
        %v655 = vpack.c.bf16 %v592, %v592
        %v656 = vpack.c.bf16 %v594, %v594
        %v657 = vpack.c.bf16 %v596, %v596
        %v658 = vld [vmem:[%s284] sm:$0xf]
        %v659 = vld [vmem:[%s284 + $0x4] sm:$0xf]
        %v660 = vld [vmem:[%s284 + $0x8] sm:$0xf]
        %v661 = vld [vmem:[%s284 + $0xc] sm:$0xf]
        %v663 = vsel %vm348, %v654, 0
        %vm665 = vcmask 1043456
        %v667 = vsel %vm665, %v658, 0
        %669 = vmatprep.subr.bf16.mxu0 0
        %670 = vmatpush1.bf16.msra.mxu0 %v667
        %671 = vmatprep.subr.bf16.mxu0 0
        %672 = vmatpush1.bf16.msra.mxu0 0
        %673 = vmatprep.subr.bf16.mxu0 0
        %674 = vmatpush1.bf16.msra.mxu0 0
        %675 = vmatprep.subr.bf16.mxu0 0
        %676 = vmatpush1.bf16.msra.mxu0 0
        %677 = vmatprep.subr.bf16.mxu0 0
        %678 = vmatpush1.bf16.msra.mxu0 0
        %679 = vmatprep.subr.bf16.mxu0 0
        %680 = vmatpush1.bf16.msra.mxu0 0
        %681 = vmatprep.subr.bf16.mxu0 0
        %682 = vmatpush1.bf16.msra.mxu0 0
        %683 = vmatprep.subr.bf16.mxu0 0
        %684 = vmatpush1.bf16.msra.mxu0 0
        %685 = vmatprep.subr.bf16.mxu0 0
        %686 = vmatpush1.bf16.msra.mxu0 0
        %687 = vmatprep.subr.bf16.mxu0 0
        %688 = vmatpush1.bf16.msra.mxu0 0
        %689 = vmatprep.subr.bf16.mxu0 0
        %690 = vmatpush1.bf16.msra.mxu0 0
        %691 = vmatprep.subr.bf16.mxu0 0
        %692 = vmatpush1.bf16.msra.mxu0 0
        %693 = vmatprep.subr.bf16.mxu0 0
        %694 = vmatpush1.bf16.msra.mxu0 0
        %695 = vmatprep.subr.bf16.mxu0 0
        %696 = vmatpush1.bf16.msra.mxu0 0
        %697 = vmatprep.subr.bf16.mxu0 0
        %698 = vmatpush1.bf16.msra.mxu0 0
        %699 = vmatprep.subr.bf16.mxu0 0
        %700 = vmatpush1.bf16.msra.mxu0 0
        %701 = vmatprep.mubr.bf16.mxu0 0
        %702 = vmatmul.mubr.bf16.gmra.mrb[0].mxu0 %v663
        %v703 = vpop.f32.mrb[0].mxu0
        %v704 = vadd.f32 0.0, %v703
        %v705 = vpop.f32.mrb[0].mxu0
        %v706 = vpop.f32.mrb[0].mxu0
        %v707 = vpop.f32.mrb[0].mxu0
        %708 = vdwg.mxu0
        %v710 = vsel %vm348, %v655, 0
        %v713 = vsel %vm665, %v659, 0
        %715 = vmatprep.subr.bf16.mxu0 0
        %716 = vmatpush1.bf16.msra.mxu0 %v713
        %717 = vmatprep.subr.bf16.mxu0 0
        %718 = vmatpush1.bf16.msra.mxu0 0
        %719 = vmatprep.subr.bf16.mxu0 0
        %720 = vmatpush1.bf16.msra.mxu0 0
        %721 = vmatprep.subr.bf16.mxu0 0
        %722 = vmatpush1.bf16.msra.mxu0 0
        %723 = vmatprep.subr.bf16.mxu0 0
        %724 = vmatpush1.bf16.msra.mxu0 0
        %725 = vmatprep.subr.bf16.mxu0 0
        %726 = vmatpush1.bf16.msra.mxu0 0
        %727 = vmatprep.subr.bf16.mxu0 0
        %728 = vmatpush1.bf16.msra.mxu0 0
        %729 = vmatprep.subr.bf16.mxu0 0
        %730 = vmatpush1.bf16.msra.mxu0 0
        %731 = vmatprep.subr.bf16.mxu0 0
        %732 = vmatpush1.bf16.msra.mxu0 0
        %733 = vmatprep.subr.bf16.mxu0 0
        %734 = vmatpush1.bf16.msra.mxu0 0
        %735 = vmatprep.subr.bf16.mxu0 0
        %736 = vmatpush1.bf16.msra.mxu0 0
        %737 = vmatprep.subr.bf16.mxu0 0
        %738 = vmatpush1.bf16.msra.mxu0 0
        %739 = vmatprep.subr.bf16.mxu0 0
        %740 = vmatpush1.bf16.msra.mxu0 0
        %741 = vmatprep.subr.bf16.mxu0 0
        %742 = vmatpush1.bf16.msra.mxu0 0
        %743 = vmatprep.subr.bf16.mxu0 0
        %744 = vmatpush1.bf16.msra.mxu0 0
        %745 = vmatprep.subr.bf16.mxu0 0
        %746 = vmatpush1.bf16.msra.mxu0 0
        %747 = vmatprep.mubr.bf16.mxu0 0
        %748 = vmatmul.mubr.bf16.gmra.mrb[0].mxu0 %v710
        %v749 = vpop.f32.mrb[0].mxu0
        %v750 = vadd.f32 0.0, %v749
        %v751 = vpop.f32.mrb[0].mxu0
        %v752 = vpop.f32.mrb[0].mxu0
        %v753 = vpop.f32.mrb[0].mxu0
        %754 = vdwg.mxu0
        %v756 = vsel %vm348, %v656, 0
        %v759 = vsel %vm665, %v660, 0
        %761 = vmatprep.subr.bf16.mxu0 0
        %762 = vmatpush1.bf16.msra.mxu0 %v759
        %763 = vmatprep.subr.bf16.mxu0 0
        %764 = vmatpush1.bf16.msra.mxu0 0
        %765 = vmatprep.subr.bf16.mxu0 0
        %766 = vmatpush1.bf16.msra.mxu0 0
        %767 = vmatprep.subr.bf16.mxu0 0
        %768 = vmatpush1.bf16.msra.mxu0 0
        %769 = vmatprep.subr.bf16.mxu0 0
        %770 = vmatpush1.bf16.msra.mxu0 0
        %771 = vmatprep.subr.bf16.mxu0 0
        %772 = vmatpush1.bf16.msra.mxu0 0
        %773 = vmatprep.subr.bf16.mxu0 0
        %774 = vmatpush1.bf16.msra.mxu0 0
        %775 = vmatprep.subr.bf16.mxu0 0
        %776 = vmatpush1.bf16.msra.mxu0 0
        %777 = vmatprep.subr.bf16.mxu0 0
        %778 = vmatpush1.bf16.msra.mxu0 0
        %779 = vmatprep.subr.bf16.mxu0 0
        %780 = vmatpush1.bf16.msra.mxu0 0
        %781 = vmatprep.subr.bf16.mxu0 0
        %782 = vmatpush1.bf16.msra.mxu0 0
        %783 = vmatprep.subr.bf16.mxu0 0
        %784 = vmatpush1.bf16.msra.mxu0 0
        %785 = vmatprep.subr.bf16.mxu0 0
        %786 = vmatpush1.bf16.msra.mxu0 0
        %787 = vmatprep.subr.bf16.mxu0 0
        %788 = vmatpush1.bf16.msra.mxu0 0
        %789 = vmatprep.subr.bf16.mxu0 0
        %790 = vmatpush1.bf16.msra.mxu0 0
        %791 = vmatprep.subr.bf16.mxu0 0
        %792 = vmatpush1.bf16.msra.mxu0 0
        %793 = vmatprep.mubr.bf16.mxu0 0
        %794 = vmatmul.mubr.bf16.gmra.mrb[0].mxu0 %v756
        %v795 = vpop.f32.mrb[0].mxu0
        %v796 = vadd.f32 0.0, %v795
        %v797 = vpop.f32.mrb[0].mxu0
        %v798 = vpop.f32.mrb[0].mxu0
        %v799 = vpop.f32.mrb[0].mxu0
        %800 = vdwg.mxu0
        %v802 = vsel %vm348, %v657, 0
        %v805 = vsel %vm665, %v661, 0
        %807 = vmatprep.subr.bf16.mxu0 0
        %808 = vmatpush1.bf16.msra.mxu0 %v805
        %809 = vmatprep.subr.bf16.mxu0 0
        %810 = vmatpush1.bf16.msra.mxu0 0
        %811 = vmatprep.subr.bf16.mxu0 0
        %812 = vmatpush1.bf16.msra.mxu0 0
        %813 = vmatprep.subr.bf16.mxu0 0
        %814 = vmatpush1.bf16.msra.mxu0 0
        %815 = vmatprep.subr.bf16.mxu0 0
        %816 = vmatpush1.bf16.msra.mxu0 0
        %817 = vmatprep.subr.bf16.mxu0 0
        %818 = vmatpush1.bf16.msra.mxu0 0
        %819 = vmatprep.subr.bf16.mxu0 0
        %820 = vmatpush1.bf16.msra.mxu0 0
        %821 = vmatprep.subr.bf16.mxu0 0
        %822 = vmatpush1.bf16.msra.mxu0 0
        %823 = vmatprep.subr.bf16.mxu0 0
        %824 = vmatpush1.bf16.msra.mxu0 0
        %825 = vmatprep.subr.bf16.mxu0 0
        %826 = vmatpush1.bf16.msra.mxu0 0
        %827 = vmatprep.subr.bf16.mxu0 0
        %828 = vmatpush1.bf16.msra.mxu0 0
        %829 = vmatprep.subr.bf16.mxu0 0
        %830 = vmatpush1.bf16.msra.mxu0 0
        %831 = vmatprep.subr.bf16.mxu0 0
        %832 = vmatpush1.bf16.msra.mxu0 0
        %833 = vmatprep.subr.bf16.mxu0 0
        %834 = vmatpush1.bf16.msra.mxu0 0
        %835 = vmatprep.subr.bf16.mxu0 0
        %836 = vmatpush1.bf16.msra.mxu0 0
        %837 = vmatprep.subr.bf16.mxu0 0
        %838 = vmatpush1.bf16.msra.mxu0 0
        %839 = vmatprep.mubr.bf16.mxu0 0
        %840 = vmatmul.mubr.bf16.gmra.mrb[0].mxu0 %v802
        %v841 = vpop.f32.mrb[0].mxu0
        %v842 = vadd.f32 0.0, %v841
        %v843 = vpop.f32.mrb[0].mxu0
        %v844 = vpop.f32.mrb[0].mxu0
        %v845 = vpop.f32.mrb[0].mxu0
        %846 = vdwg.mxu0
        %v847 = vadd.f32 %v650, %v704
        %v848 = vadd.f32 %v651, %v750
        %v849 = vadd.f32 %v652, %v796
        %v850 = vadd.f32 %v653, %v842
        %851 = vst.msk [vmem:[#allocation4] sm:$0xff] %vm348, %v847
        %852 = vst.msk [vmem:[#allocation4 + $0x8] sm:$0xff] %vm348, %v848
        %853 = vst.msk [vmem:[#allocation4 + $0x10] sm:$0xff] %vm348, %v849
        %854 = vst.msk [vmem:[#allocation4 + $0x18] sm:$0xff] %vm348, %v850
        %855 = vst.msk [vmem:[#allocation2] sm:$0xff] %vm621, %v549
        %856 = vst.msk [vmem:[#allocation2 + $0x8] sm:$0xff] %vm621, %v550
        %857 = vst.msk [vmem:[#allocation2 + $0x10] sm:$0xff] %vm621, %v551
        %858 = vst.msk [vmem:[#allocation2 + $0x18] sm:$0xff] %vm621, %v552
        // Predicated region
        $region49: #{gpt3_block_forward.5} parent=31 // pred_check
          %p859 = pneg %p322
        $region50: #{gpt3_block_forward.5} parent=31 // pred_check_branch
          %861 = sbr.rel (%p859) target = $region52
        $region51: #{gpt3_block_forward.5} parent=31 // pred_region
          %v862 = vld [vmem:[#allocation4] sm:$0xff]
          %v863 = vld [vmem:[#allocation4 + $0x8] sm:$0xff]
          %v864 = vld [vmem:[#allocation4 + $0x10] sm:$0xff]
          %v865 = vld [vmem:[#allocation4 + $0x18] sm:$0xff]
          %v866 = vld [vmem:[#allocation3] sm:$0xff]
          %v867 = vld [vmem:[#allocation3 + $0x8] sm:$0xff]
          %v868 = vld [vmem:[#allocation3 + $0x10] sm:$0xff]
          %v869 = vld [vmem:[#allocation3 + $0x18] sm:$0xff]
          %v870 = vrcp.pop %v866
          %v871 = vrcp.pop %v867
          %v872 = vrcp.pop %v868
          %v873 = vrcp.pop %v869
          %875 = vset.pattern.permute.xlu0 0
          %876 = vperm.xlu0 %875, %v870
          %v877 = vpop.permute.xlu0 %876
          %880 = vset.pattern.permute.xlu0 0
          %881 = vperm.xlu0 %880, %v871
          %v882 = vpop.permute.xlu0 %881
          %885 = vset.pattern.permute.xlu0 0
          %886 = vperm.xlu0 %885, %v872
          %v887 = vpop.permute.xlu0 %886
          %890 = vset.pattern.permute.xlu0 0
          %891 = vperm.xlu0 %890, %v873
          %v892 = vpop.permute.xlu0 %891
          %v894 = vmul.f32 %v862, %v877
          %v895 = vmul.f32 %v863, %v882
          %v896 = vmul.f32 %v864, %v887
          %v897 = vmul.f32 %v865, %v892
          %v898 = vpack.c.bf16 %v894, %v894
          %v899 = vpack.c.bf16 %v895, %v895
          %v900 = vpack.c.bf16 %v896, %v896
          %v901 = vpack.c.bf16 %v897, %v897
          %vm902 = vcmask 60416
          %903 = vst.msk [vmem:[%s316] sm:$0xf] %vm902, %v898
          %904 = vst.msk [vmem:[%s316 + $0x4] sm:$0xf] %vm902, %v899
          %905 = vst.msk [vmem:[%s316 + $0x8] sm:$0xf] %vm902, %v900
          %906 = vst.msk [vmem:[%s316 + $0xc] sm:$0xf] %vm902, %v901
        $region52: #{gpt3_block_forward.5} parent=31 // pred_fallthru
          _
        %s907 = sand.u32 %s151, 1
        %s908 = scalar_lea.sflag [#allocation7], %s907
        %s909 = sand.u32 %s151, 1
        %s910 = smul.addr %s909, 16
        %s911 = scalar_lea.vmem [#allocation11], %s910
        // Predicated region
        $region53: #{gpt3_block_forward.5} parent=31 // pred_check
          %p912 = pneg %p161
        $region54: #{gpt3_block_forward.5} parent=31 // pred_check_branch
          %914 = sbr.rel (%p912) target = $region56
        $region55: #{gpt3_block_forward.5} parent=31 // pred_region
          %s915 = smul.u32 4, %s30
          %s917 = ssub.s32 256, 256
          %918 = vsyncadd %s908, %s917
          %s919 = sadd.s32 %s31, %s915
          %s920 = smul.addr %s29, 4
          %s921 = sadd.s32 %s919, %s920
          %s922 = smul.addr %s921, 64
          %s923 = scalar_lea.hbm %s3, %s922
          %s924 = sshll.u32 %s911, 4
          %s925 = int_to_ptr.vmem [resolvable:$true] %s924
          %930 = dma.vmem_to_hbm [thread:$0]  %s925, 256, %s923, %s908, 64, 64, 4
        $region56: #{gpt3_block_forward.5} parent=31 // pred_fallthru
          _
      $region32: #{gpt3_block_forward.5} parent=5 // pred_fallthru
        _
      %p931 = scmp.le.s32.totalorder 2, %s18
      // Predicated region
      $region57: #{gpt3_block_forward.5} parent=5 // pred_check
        %p932 = pneg %p931
      $region58: #{gpt3_block_forward.5} parent=5 // pred_check_branch
        %934 = sbr.rel (%p932) target = $region60
      $region59: #{gpt3_block_forward.5} parent=5 // pred_region
        %s935 = ssub.s32 %s18, 2
        // Predicated region
        $region61: #{gpt3_block_forward.5} parent=59 // pred_check
          %p936 = pneg %p167
        $region62: #{gpt3_block_forward.5} parent=59 // pred_check_branch
          %938 = sbr.rel (%p936) target = $region64
        $region63: #{gpt3_block_forward.5} parent=59 // pred_region
          %s939 = sand.u32 %s152, 1
          %s940 = scalar_lea.sflag [#allocation7], %s939
          %s941 = sand.u32 %s152, 1
          %s942 = smul.addr %s941, 16
          %s943 = scalar_lea.vmem [#allocation11], %s942
          %944 = dma.done %s940, 256
        $region64: #{gpt3_block_forward.5} parent=59 // pred_fallthru
          _
      $region60: #{gpt3_block_forward.5} parent=5 // pred_fallthru
        _
    $region6: #{gpt3_block_forward.5} parent=1 // loop_footer
      %s22 = sadd.s32 1, %s18
    $region7: #{gpt3_block_forward.5} parent=1 // loop_footer_branch
      %17 = sbr.rel target = $region3
    $region8: #{gpt3_block_forward.5} parent=1 // loop_exit
      _
    %945 = vsyncpa [#allocation6], 1
    %s946 = scalar_lea.sflag [#allocation6], 1
    %947 = vsyncpa %s946, 1
    %948 = vsyncpa [#allocation9], 1
    %s949 = scalar_lea.sflag [#allocation9], 1
    %950 = vsyncpa %s949, 1
    %951 = vsyncpa [#allocation7], 1
    %s952 = scalar_lea.sflag [#allocation7], 1
    %953 = vsyncpa %s952, 1

// kernel: gpt3_block_forward.7
$region0: #{gpt3_block_forward.7}
  #allocation0 [shape = 'u32[]', space=smem, size = 0x4, offset = 0x4, fixed_abs, tag = 'smem constant byte address 0x4 - core index']
  #allocation1 [shape = 'u32[144,128]{1,0:T(1,128)}', space=vmem, size = 0x12000, scoped, tag = 'internal scratch']
  #allocation2 [shape = 'bf16[16,32]{1,0:T(16,128)(2,1)}', space=vmem, size = 0x1000, scoped, tag = 'scratch operand']
  %s0 = inlined_call_operand.hbm [shape: f32[16,32], index: 0, kind: input, shape index: {}]
  %s1 = inlined_call_operand.hbm [shape: f32[1,32], index: 1, kind: input, shape index: {}]
  %s2 = inlined_call_operand.hbm [shape: f32[1,32], index: 2, kind: input, shape index: {}]
  %s3 = inlined_call_operand.hbm [shape: bf16[32,128], index: 3, kind: input, shape index: {}]
  %s4 = inlined_call_operand.hbm [shape: f32[1,128], index: 4, kind: input, shape index: {}]
  %s5 = inlined_call_operand.hbm [shape: bf16[128,32], index: 5, kind: input, shape index: {}]
  %s6 = inlined_call_operand.hbm [shape: f32[1,32], index: 6, kind: input, shape index: {}]
  %s7 = inlined_call_operand.hbm [shape: f32[16,32], index: 7, kind: output, shape index: {}]
  %s8 = sld [smem:[#allocation0]]
  $region70: #{gpt3_block_forward.7} parent=0
    _
  %s10 = ssub.s32 1, %s8
  %s11 = scalar_select 0, %s10, %s8
  $region1: #{gpt3_block_forward.7} parent=0
    #allocation3 [shape = 'u8[8192]{0}', space=vmem, size = 0x2000, scoped, tag = 'input window, operand 0, single buffered']
    #allocation4 [shape = 's32[1]{0}', space=sflag, size = 0x4, scoped, tag = 'scoped memory for gpt3_block_forward.7']
    #allocation5 [shape = 's32[1]{0}', space=sflag, size = 0x4, scoped, tag = 'scoped memory for gpt3_block_forward.7']
    #allocation6 [shape = 'u8[512]{0}', space=vmem, size = 0x400, scoped, tag = 'input window, operand 1, single buffered']
    #allocation7 [shape = 's32[1]{0}', space=sflag, size = 0x4, scoped, tag = 'scoped memory for gpt3_block_forward.7']
    #allocation8 [shape = 'u8[512]{0}', space=vmem, size = 0x400, scoped, tag = 'input window, operand 2, single buffered']
    #allocation9 [shape = 'u8[8192]{0}', space=vmem, size = 0x2000, scoped, tag = 'input window, operand 3, single buffered']
    #allocation10 [shape = 's32[1]{0}', space=sflag, size = 0x4, scoped, tag = 'scoped memory for gpt3_block_forward.7']
    #allocation11 [shape = 'u8[512]{0}', space=vmem, size = 0x400, scoped, tag = 'input window, operand 4, single buffered']
    #allocation12 [shape = 'u8[32768]{0}', space=vmem, size = 0x8000, scoped, tag = 'input window, operand 5, single buffered']
    #allocation13 [shape = 's32[1]{0}', space=sflag, size = 0x4, scoped, tag = 'scoped memory for gpt3_block_forward.7']
    #allocation14 [shape = 'u8[512]{0}', space=vmem, size = 0x400, scoped, tag = 'input window, operand 6, single buffered']
    #allocation15 [shape = 'u8[8192]{0}', space=vmem, size = 0x2000, scoped, tag = 'output window, operand 0, single buffered']
    %12 = vsyncpa [#allocation4], 0
    %13 = vsyncpa [#allocation7], 0
    %14 = vsyncpa [#allocation10], 0
    %15 = vsyncpa [#allocation13], 0
    %16 = vsyncpa [#allocation5], 0
    // Predicated region
    $region2: #{gpt3_block_forward.7} parent=1 // pred_check
      _
    $region3: #{gpt3_block_forward.7} parent=1 // pred_check_branch
      %18 = sbr.rel (0) target = $region5
    $region4: #{gpt3_block_forward.7} parent=1 // pred_region
      %s20 = ssub.s32 256, 256
      %21 = vsyncadd [#allocation4], %s20
      %s22 = sshll.u32 [#allocation3], 4
      %s23 = int_to_ptr.vmem [resolvable:$true] %s22
      %28 = dma.hbm_to_vmem [thread:$0]  %s0, 256, %s23, [#allocation4], 128, 128, 8
    $region5: #{gpt3_block_forward.7} parent=1 // pred_fallthru
      _
    // Predicated region
    $region6: #{gpt3_block_forward.7} parent=1 // pred_check
      _
    $region7: #{gpt3_block_forward.7} parent=1 // pred_check_branch
      %30 = sbr.rel (0) target = $region9
    $region8: #{gpt3_block_forward.7} parent=1 // pred_region
      %s32 = ssub.s32 16, 16
      %33 = vsyncadd [#allocation7], %s32
      %s35 = sshll.u32 [#allocation6], 4
      %s36 = int_to_ptr.vmem [resolvable:$true] %s35
      %38 = dma.hbm_to_vmem [thread:$0]  %s1, 16, %s36, [#allocation7]
    $region9: #{gpt3_block_forward.7} parent=1 // pred_fallthru
      _
    // Predicated region
    $region10: #{gpt3_block_forward.7} parent=1 // pred_check
      _
    $region11: #{gpt3_block_forward.7} parent=1 // pred_check_branch
      %40 = sbr.rel (0) target = $region13
    $region12: #{gpt3_block_forward.7} parent=1 // pred_region
      %s42 = ssub.s32 16, 16
      %43 = vsyncadd [#allocation7], %s42
      %s45 = sshll.u32 [#allocation8], 4
      %s46 = int_to_ptr.vmem [resolvable:$true] %s45
      %48 = dma.hbm_to_vmem [thread:$0]  %s2, 16, %s46, [#allocation7]
    $region13: #{gpt3_block_forward.7} parent=1 // pred_fallthru
      _
    // Predicated region
    $region14: #{gpt3_block_forward.7} parent=1 // pred_check
      _
    $region15: #{gpt3_block_forward.7} parent=1 // pred_check_branch
      %50 = sbr.rel (0) target = $region17
    $region16: #{gpt3_block_forward.7} parent=1 // pred_region
      %s52 = ssub.s32 256, 256
      %53 = vsyncadd [#allocation10], %s52
      %s54 = sshll.u32 [#allocation9], 4
      %s55 = int_to_ptr.vmem [resolvable:$true] %s54
      %60 = dma.hbm_to_vmem [thread:$0]  %s3, 256, %s55, [#allocation10], 64, 64, 4
    $region17: #{gpt3_block_forward.7} parent=1 // pred_fallthru
      _
    // Predicated region
    $region18: #{gpt3_block_forward.7} parent=1 // pred_check
      _
    $region19: #{gpt3_block_forward.7} parent=1 // pred_check_branch
      %62 = sbr.rel (0) target = $region21
    $region20: #{gpt3_block_forward.7} parent=1 // pred_region
      %s64 = ssub.s32 16, 16
      %65 = vsyncadd [#allocation10], %s64
      %s67 = sshll.u32 [#allocation11], 4
      %s68 = int_to_ptr.vmem [resolvable:$true] %s67
      %70 = dma.hbm_to_vmem [thread:$0]  %s4, 16, %s68, [#allocation10]
    $region21: #{gpt3_block_forward.7} parent=1 // pred_fallthru
      _
    // Predicated region
    $region22: #{gpt3_block_forward.7} parent=1 // pred_check
      _
    $region23: #{gpt3_block_forward.7} parent=1 // pred_check_branch
      %72 = sbr.rel (0) target = $region25
    $region24: #{gpt3_block_forward.7} parent=1 // pred_region
      %s74 = ssub.s32 1024, 1024
      %75 = vsyncadd [#allocation13], %s74
      %s76 = sshll.u32 [#allocation12], 4
      %s77 = int_to_ptr.vmem [resolvable:$true] %s76
      %82 = dma.hbm_to_vmem [thread:$0]  %s5, 1024, %s77, [#allocation13], 64, 64, 4
    $region25: #{gpt3_block_forward.7} parent=1 // pred_fallthru
      _
    // Predicated region
    $region26: #{gpt3_block_forward.7} parent=1 // pred_check
      _
    $region27: #{gpt3_block_forward.7} parent=1 // pred_check_branch
      %84 = sbr.rel (0) target = $region29
    $region28: #{gpt3_block_forward.7} parent=1 // pred_region
      %s86 = ssub.s32 16, 16
      %87 = vsyncadd [#allocation13], %s86
      %s89 = sshll.u32 [#allocation14], 4
      %s90 = int_to_ptr.vmem [resolvable:$true] %s89
      %92 = dma.hbm_to_vmem [thread:$0]  %s6, 16, %s90, [#allocation13]
    $region29: #{gpt3_block_forward.7} parent=1 // pred_fallthru
      _
    // Predicated region
    $region30: #{gpt3_block_forward.7} parent=1 // pred_check
      _
    $region31: #{gpt3_block_forward.7} parent=1 // pred_check_branch
      %94 = sbr.rel (0) target = $region33
    $region32: #{gpt3_block_forward.7} parent=1 // pred_region
      %95 = dma.done [#allocation4], 256
    $region33: #{gpt3_block_forward.7} parent=1 // pred_fallthru
      _
    // Predicated region
    $region34: #{gpt3_block_forward.7} parent=1 // pred_check
      _
    $region35: #{gpt3_block_forward.7} parent=1 // pred_check_branch
      %97 = sbr.rel (0) target = $region37
    $region36: #{gpt3_block_forward.7} parent=1 // pred_region
      %98 = dma.done [#allocation7], 16
    $region37: #{gpt3_block_forward.7} parent=1 // pred_fallthru
      _
    // Predicated region
    $region38: #{gpt3_block_forward.7} parent=1 // pred_check
      _
    $region39: #{gpt3_block_forward.7} parent=1 // pred_check_branch
      %100 = sbr.rel (0) target = $region41
    $region40: #{gpt3_block_forward.7} parent=1 // pred_region
      %101 = dma.done [#allocation7], 16
    $region41: #{gpt3_block_forward.7} parent=1 // pred_fallthru
      _
    // Predicated region
    $region42: #{gpt3_block_forward.7} parent=1 // pred_check
      _
    $region43: #{gpt3_block_forward.7} parent=1 // pred_check_branch
      %103 = sbr.rel (0) target = $region45
    $region44: #{gpt3_block_forward.7} parent=1 // pred_region
      %104 = dma.done [#allocation10], 256
    $region45: #{gpt3_block_forward.7} parent=1 // pred_fallthru
      _
    // Predicated region
    $region46: #{gpt3_block_forward.7} parent=1 // pred_check
      _
    $region47: #{gpt3_block_forward.7} parent=1 // pred_check_branch
      %106 = sbr.rel (0) target = $region49
    $region48: #{gpt3_block_forward.7} parent=1 // pred_region
      %107 = dma.done [#allocation10], 16
    $region49: #{gpt3_block_forward.7} parent=1 // pred_fallthru
      _
    // Predicated region
    $region50: #{gpt3_block_forward.7} parent=1 // pred_check
      _
    $region51: #{gpt3_block_forward.7} parent=1 // pred_check_branch
      %109 = sbr.rel (0) target = $region53
    $region52: #{gpt3_block_forward.7} parent=1 // pred_region
      %110 = dma.done [#allocation13], 1024
    $region53: #{gpt3_block_forward.7} parent=1 // pred_fallthru
      _
    // Predicated region
    $region54: #{gpt3_block_forward.7} parent=1 // pred_check
      _
    $region55: #{gpt3_block_forward.7} parent=1 // pred_check_branch
      %112 = sbr.rel (0) target = $region57
    $region56: #{gpt3_block_forward.7} parent=1 // pred_region
      %113 = dma.done [#allocation13], 16
    $region57: #{gpt3_block_forward.7} parent=1 // pred_fallthru
      _
    %p115 = scmp.eq.s32.totalorder 0, 0
    // Predicated region
    $region58: #{gpt3_block_forward.7} parent=1 // pred_check
      %p116 = pneg %p115
    $region59: #{gpt3_block_forward.7} parent=1 // pred_check_branch
      %118 = sbr.rel (%p116) target = $region61
    $region60: #{gpt3_block_forward.7} parent=1 // pred_region
      %v119 = vld [vmem:[#allocation3] sm:$0xff]
      %v120 = vld [vmem:[#allocation3 + $0x8] sm:$0xff]
      %v121 = vld [vmem:[#allocation6] sm:$0x1]
      %v122 = vld [vmem:[#allocation8] sm:$0x1]
      %vm123 = vcmask 261120
      %v124 = vsel %vm123, %v119, 0.0
      %125 = vadd.xlane.f32.xlu0 %v124
      %v126 = vpop.xlane.xlu0 %125
      %v127 = vsel %vm123, %v120, 0.0
      %128 = vadd.xlane.f32.xlu0 %v127
      %v129 = vpop.xlane.xlu0 %128
      %v130 = vrcp.pop 32.0
      %v131 = vmul.f32 %v126, %v130
      %v132 = vmul.f32 %v129, %v130
      %v133 = vsub.f32 %v119, %v131
      %v134 = vsub.f32 %v120, %v132
      %v135 = vmul.f32 %v133, %v133
      %v136 = vmul.f32 %v134, %v134
      %v137 = vsel %vm123, %v135, 0.0
      %138 = vadd.xlane.f32.xlu0 %v137
      %v139 = vpop.xlane.xlu0 %138
      %v140 = vsel %vm123, %v136, 0.0
      %141 = vadd.xlane.f32.xlu0 %v140
      %v142 = vpop.xlane.xlu0 %141
      %v143 = vmul.f32 %v139, %v130
      %v144 = vmul.f32 %v142, %v130
      %v145 = vadd.f32 %v143, 1e-05
      %v146 = vadd.f32 %v144, 1e-05
      %v147 = vrsqrt.pop %v145
      %v148 = vrsqrt.pop %v146
      %v149 = vmul.f32 %v133, %v147
      %v150 = vmul.f32 %v134, %v148
      %v152 = vlaneseq
      %v153 = vshrl.u32 %v152, 7
      %v154 = vsub.s32 0, %v153
      %v155 = vrot.slane %v121, %v154
      %v157 = vmul.f32 %v149, %v155
      %v158 = vmul.f32 %v150, %v155
      %v160 = vlaneseq
      %v161 = vshrl.u32 %v160, 7
      %v162 = vsub.s32 0, %v161
      %v163 = vrot.slane %v122, %v162
      %v165 = vadd.f32 %v157, %v163
      %v166 = vadd.f32 %v158, %v163
      %v167 = vpack.c.bf16 %v166, %v165
      %168 = vst.msk [vmem:[#allocation2] sm:$0xff] %vm123, %v167
      %v169 = vld [vmem:[#allocation14] sm:$0x1]
      %v171 = vlaneseq
      %v172 = vshrl.u32 %v171, 7
      %v173 = vsub.s32 0, %v172
      %v174 = vrot.slane %v169, %v173
      %v176 = vadd.f32 %v119, %v174
      %v177 = vadd.f32 %v120, %v174
      %178 = vst.msk [vmem:[#allocation15] sm:$0xff] %vm123, %v176
      %179 = vst.msk [vmem:[#allocation15 + $0x8] sm:$0xff] %vm123, %v177
    $region61: #{gpt3_block_forward.7} parent=1 // pred_fallthru
      _
    %v180 = vld [vmem:[#allocation2] sm:$0xff]
    %v181 = vld [vmem:[#allocation9] sm:$0xf]
    %v182 = vld [vmem:[#allocation9 + $0x4] sm:$0xf]
    %v183 = vld [vmem:[#allocation9 + $0x8] sm:$0xf]
    %v184 = vld [vmem:[#allocation9 + $0xc] sm:$0xf]
    %v185 = vld [vmem:[#allocation11] sm:$0x1]
    %v187 = vlaneseq
    %v188 = vshrl.u32 %v187, 7
    %v189 = vsub.s32 0, %v188
    %v190 = vrot.slane %v185, %v189
    %v196 = vunpack.c.l.b16 %v181
    %v197 = vunpack.c.l.b16 %v182
    %v198 = vunpack.c.l.b16 %v183
    %v199 = vunpack.c.l.b16 %v184
    %v200 = vpack.c.b16 %v197, %v196
    %v201 = vpack.c.b16 %v199, %v198
    %vm204 = vcmask 261120
    %v206 = vsel %vm204, %v180, 0
    %208 = vmatprep.subr.bf16.mxu0 0
    %209 = vmatpush1.bf16.msra.mxu0 %v200
    %210 = vmatprep.subr.bf16.mxu0 0
    %211 = vmatpush1.bf16.msra.mxu0 %v201
    %212 = vmatprep.subr.bf16.mxu0 0
    %213 = vmatpush1.bf16.msra.mxu0 0
    %214 = vmatprep.subr.bf16.mxu0 0
    %215 = vmatpush1.bf16.msra.mxu0 0
    %216 = vmatprep.subr.bf16.mxu0 0
    %217 = vmatpush1.bf16.msra.mxu0 0
    %218 = vmatprep.subr.bf16.mxu0 0
    %219 = vmatpush1.bf16.msra.mxu0 0
    %220 = vmatprep.subr.bf16.mxu0 0
    %221 = vmatpush1.bf16.msra.mxu0 0
    %222 = vmatprep.subr.bf16.mxu0 0
    %223 = vmatpush1.bf16.msra.mxu0 0
    %224 = vmatprep.subr.bf16.mxu0 0
    %225 = vmatpush1.bf16.msra.mxu0 0
    %226 = vmatprep.subr.bf16.mxu0 0
    %227 = vmatpush1.bf16.msra.mxu0 0
    %228 = vmatprep.subr.bf16.mxu0 0
    %229 = vmatpush1.bf16.msra.mxu0 0
    %230 = vmatprep.subr.bf16.mxu0 0
    %231 = vmatpush1.bf16.msra.mxu0 0
    %232 = vmatprep.subr.bf16.mxu0 0
    %233 = vmatpush1.bf16.msra.mxu0 0
    %234 = vmatprep.subr.bf16.mxu0 0
    %235 = vmatpush1.bf16.msra.mxu0 0
    %236 = vmatprep.subr.bf16.mxu0 0
    %237 = vmatpush1.bf16.msra.mxu0 0
    %238 = vmatprep.subr.bf16.mxu0 0
    %239 = vmatpush1.bf16.msra.mxu0 0
    %240 = vmatprep.mubr.bf16.mxu0 0
    %241 = vmatmul.mubr.bf16.gmra.mrb[0].mxu0 %v206
    %v242 = vpop.f32.mrb[0].mxu0
    %v243 = vadd.f32 %v190, %v242
    %v244 = vpop.f32.mrb[0].mxu0
    %v245 = vpop.f32.mrb[0].mxu0
    %v246 = vadd.f32 %v190, %v245
    %v247 = vpop.f32.mrb[0].mxu0
    %248 = vdwg.mxu0
    %v249 = vmul.f32 %v243, 0.5
    %v250 = vmul.f32 %v246, 0.5
    %v251 = vmul.f32 %v243, 0.70710677
    %v252 = vmul.f32 %v246, 0.70710677
    %vm253 = vcmp.ge.f32.partialorder %v251, 0.0
    %vm254 = vcmp.ge.f32.partialorder %v252, 0.0
    %v255 = vsel %vm253, 1.0, -1.0
    %v256 = vsel %vm254, 1.0, -1.0
    %v257 = vand.u32 2147483647, %v251
    %v258 = vand.u32 2147483647, %v252
    %v259 = vmul.f32 %v257, 0.3275911
    %v260 = vmul.f32 %v258, 0.3275911
    %v261 = vadd.f32 %v259, 1.0
    %v262 = vadd.f32 %v260, 1.0
    %v263 = vrcp.pop %v261
    %v264 = vrcp.pop %v262
    %v265 = vmul.f32 %v263, 1.0614054
    %v266 = vmul.f32 %v264, 1.0614054
    %v267 = vadd.f32 %v265, -1.4531521
    %v268 = vadd.f32 %v266, -1.4531521
    %v269 = vmul.f32 %v267, %v263
    %v270 = vmul.f32 %v268, %v264
    %v271 = vadd.f32 %v269, 1.4214138
    %v272 = vadd.f32 %v270, 1.4214138
    %v273 = vmul.f32 %v271, %v263
    %v274 = vmul.f32 %v272, %v264
    %v275 = vadd.f32 %v273, -0.28449672
    %v276 = vadd.f32 %v274, -0.28449672
    %v277 = vmul.f32 %v275, %v263
    %v278 = vmul.f32 %v276, %v264
    %v279 = vadd.f32 %v277, 0.2548296
    %v280 = vadd.f32 %v278, 0.2548296
    %v281 = vmul.f32 %v279, %v263
    %v282 = vmul.f32 %v280, %v264
    %v283 = vsub.f32 0.0, %v257
    %v284 = vsub.f32 0.0, %v258
    %v285 = vmul.f32 %v283, %v257
    %v286 = vmul.f32 %v284, %v258
    %v287 = vmul.f32 %v285, 1.442695
    %v288 = vpow.pop %v287
    %v289 = vmul.f32 %v286, 1.442695
    %v290 = vpow.pop %v289
    %v291 = vmul.f32 %v281, %v288
    %v292 = vmul.f32 %v282, %v290
    %v293 = vsub.f32 1.0, %v291
    %v294 = vsub.f32 1.0, %v292
    %v295 = vmul.f32 %v255, %v293
    %v296 = vmul.f32 %v256, %v294
    %v297 = vadd.f32 %v295, 1.0
    %v298 = vadd.f32 %v296, 1.0
    %v299 = vmul.f32 %v249, %v297
    %v300 = vmul.f32 %v250, %v298
    %v301 = vld [vmem:[#allocation15] sm:$0xff]
    %v302 = vld [vmem:[#allocation15 + $0x8] sm:$0xff]
    %v303 = vpack.c.bf16 %v300, %v299
    %v304 = vld [vmem:[#allocation12] sm:$0xf]
    %v305 = vld [vmem:[#allocation12 + $0x4] sm:$0xf]
    %v306 = vld [vmem:[#allocation12 + $0x8] sm:$0xf]
    %v307 = vld [vmem:[#allocation12 + $0xc] sm:$0xf]
    %v308 = vld [vmem:[#allocation12 + $0x10] sm:$0xf]
    %v309 = vld [vmem:[#allocation12 + $0x14] sm:$0xf]
    %v310 = vld [vmem:[#allocation12 + $0x18] sm:$0xf]
    %v311 = vld [vmem:[#allocation12 + $0x1c] sm:$0xf]
    %v312 = vld [vmem:[#allocation12 + $0x20] sm:$0xf]
    %v313 = vld [vmem:[#allocation12 + $0x24] sm:$0xf]
    %v314 = vld [vmem:[#allocation12 + $0x28] sm:$0xf]
    %v315 = vld [vmem:[#allocation12 + $0x2c] sm:$0xf]
    %v316 = vld [vmem:[#allocation12 + $0x30] sm:$0xf]
    %v317 = vld [vmem:[#allocation12 + $0x34] sm:$0xf]
    %v318 = vld [vmem:[#allocation12 + $0x38] sm:$0xf]
    %v319 = vld [vmem:[#allocation12 + $0x3c] sm:$0xf]
    %v336 = vunpack.c.l.b16 %v304
    %v337 = vunpack.c.l.b16 %v305
    %v338 = vunpack.c.l.b16 %v306
    %v339 = vunpack.c.l.b16 %v307
    %v340 = vunpack.c.l.b16 %v308
    %v341 = vunpack.c.l.b16 %v309
    %v342 = vunpack.c.l.b16 %v310
    %v343 = vunpack.c.l.b16 %v311
    %v344 = vunpack.c.l.b16 %v312
    %v345 = vunpack.c.l.b16 %v313
    %v346 = vunpack.c.l.b16 %v314
    %v347 = vunpack.c.l.b16 %v315
    %v348 = vunpack.c.l.b16 %v316
    %v349 = vunpack.c.l.b16 %v317
    %v350 = vunpack.c.l.b16 %v318
    %v351 = vunpack.c.l.b16 %v319
    %v352 = vpack.c.b16 %v337, %v336
    %v353 = vpack.c.b16 %v339, %v338
    %v354 = vpack.c.b16 %v341, %v340
    %v355 = vpack.c.b16 %v343, %v342
    %v356 = vpack.c.b16 %v345, %v344
    %v357 = vpack.c.b16 %v347, %v346
    %v358 = vpack.c.b16 %v349, %v348
    %v359 = vpack.c.b16 %v351, %v350
    %368 = vmatprep.subr.bf16.mxu0 0
    %369 = vmatpush1.bf16.msra.mxu0 %v352
    %370 = vmatprep.subr.bf16.mxu0 0
    %371 = vmatpush1.bf16.msra.mxu0 %v353
    %372 = vmatprep.subr.bf16.mxu0 0
    %373 = vmatpush1.bf16.msra.mxu0 %v354
    %374 = vmatprep.subr.bf16.mxu0 0
    %375 = vmatpush1.bf16.msra.mxu0 %v355
    %376 = vmatprep.subr.bf16.mxu0 0
    %377 = vmatpush1.bf16.msra.mxu0 %v356
    %378 = vmatprep.subr.bf16.mxu0 0
    %379 = vmatpush1.bf16.msra.mxu0 %v357
    %380 = vmatprep.subr.bf16.mxu0 0
    %381 = vmatpush1.bf16.msra.mxu0 %v358
    %382 = vmatprep.subr.bf16.mxu0 0
    %383 = vmatpush1.bf16.msra.mxu0 %v359
    %384 = vmatprep.subr.bf16.mxu0 0
    %385 = vmatpush1.bf16.msra.mxu0 0
    %386 = vmatprep.subr.bf16.mxu0 0
    %387 = vmatpush1.bf16.msra.mxu0 0
    %388 = vmatprep.subr.bf16.mxu0 0
    %389 = vmatpush1.bf16.msra.mxu0 0
    %390 = vmatprep.subr.bf16.mxu0 0
    %391 = vmatpush1.bf16.msra.mxu0 0
    %392 = vmatprep.subr.bf16.mxu0 0
    %393 = vmatpush1.bf16.msra.mxu0 0
    %394 = vmatprep.subr.bf16.mxu0 0
    %395 = vmatpush1.bf16.msra.mxu0 0
    %396 = vmatprep.subr.bf16.mxu0 0
    %397 = vmatpush1.bf16.msra.mxu0 0
    %398 = vmatprep.subr.bf16.mxu0 0
    %399 = vmatpush1.bf16.msra.mxu0 0
    %400 = vmatprep.mubr.bf16.mxu0 0
    %401 = vmatmul.mubr.bf16.gmra.mrb[0].mxu0 %v303
    %v402 = vpop.f32.mrb[0].mxu0
    %v403 = vadd.f32 0.0, %v402
    %v404 = vpop.f32.mrb[0].mxu0
    %v405 = vpop.f32.mrb[0].mxu0
    %v406 = vadd.f32 0.0, %v405
    %v407 = vpop.f32.mrb[0].mxu0
    %408 = vdwg.mxu0
    %v409 = vadd.f32 %v301, %v403
    %v410 = vadd.f32 %v302, %v406
    %411 = vst.msk [vmem:[#allocation15] sm:$0xff] %vm204, %v409
    %412 = vst.msk [vmem:[#allocation15 + $0x8] sm:$0xff] %vm204, %v410
    // Predicated region
    $region62: #{gpt3_block_forward.7} parent=1 // pred_check
      _
    $region63: #{gpt3_block_forward.7} parent=1 // pred_check_branch
      %414 = sbr.rel (0) target = $region65
    $region64: #{gpt3_block_forward.7} parent=1 // pred_region
      %s416 = ssub.s32 256, 256
      %417 = vsyncadd [#allocation5], %s416
      %s418 = sshll.u32 [#allocation15], 4
      %s419 = int_to_ptr.vmem [resolvable:$true] %s418
      %424 = dma.vmem_to_hbm [thread:$0]  %s419, 256, %s7, [#allocation5], 128, 128, 8
    $region65: #{gpt3_block_forward.7} parent=1 // pred_fallthru
      _
    // Predicated region
    $region66: #{gpt3_block_forward.7} parent=1 // pred_check
      _
    $region67: #{gpt3_block_forward.7} parent=1 // pred_check_branch
      %426 = sbr.rel (0) target = $region69
    $region68: #{gpt3_block_forward.7} parent=1 // pred_region
      %427 = dma.done [#allocation5], 256
    $region69: #{gpt3_block_forward.7} parent=1 // pred_fallthru
      _
    %428 = vsyncpa [#allocation4], 1
    %429 = vsyncpa [#allocation7], 1
    %430 = vsyncpa [#allocation10], 1
    %431 = vsyncpa [#allocation13], 1
    %432 = vsyncpa [#allocation5], 1

</llo_original>
